<compile_context>
chip_gen: v5e
topology: v5e:2x2
jax: 0.10.0
libtpu: 0.0.40
codegen_flags: <defaults>
</compile_context>

<pallas_src>
import functools

import numpy as np
import jax
import jax.numpy as jnp
from jax.experimental import pallas as pl
from jax.experimental.pallas import tpu as pltpu

LANE = 128        # lane width (last dim)
SUBLANE_BF16 = 16 # bf16 sublane packing (second-to-last dim), safe superset of f32's 8


def _round_up(v, m):
    return (v + m - 1) // m * m


def _pad2(a, rows, cols, dtype=None):
    a = jnp.asarray(a)
    dtype = a.dtype if dtype is None else dtype
    out = jnp.zeros((rows, cols), dtype)
    return out.at[: a.shape[0], : a.shape[1]].set(a.astype(dtype))


# ------------------------------------------------------------------- kernel --
def fused_gnn_kernel(tile_type_ref,            # scalar-prefetch (SMEM), used only in index_maps
                     x_ref, segw_ref, wi_ref,
                     w1_ref, b1_ref, g1_ref, be1_ref,
                     w2_ref, b2_ref, g2_ref, be2_ref,
                     wo_ref, bo_ref,
                     out_ref, z_ref,
                     *, l1, l2, eps):
    i = pl.program_id(0)

    @pl.when(i == 0)
    def _():
        z_ref[...] = jnp.zeros_like(z_ref)

    # ---- init_batch: one K=128 bf16 MXU matmul per tile (bias folded into the ones lane) ----
    h = jnp.dot(x_ref[...], wi_ref[...],
                preferred_element_type=jnp.float32)          # (tile_n, h_pad) f32

    # ---- readout: standard (g_pad, tile_n) @ (tile_n, h_pad) accumulation into resident z ----
    z_ref[...] += jnp.dot(segw_ref[...], h.astype(jnp.bfloat16),
                          preferred_element_type=jnp.float32)

    # ---- fcout epilogue: runs once, on the last node tile ----
    @pl.when(i == pl.num_programs(0) - 1)
    def _():
        def layer_norm(v, real_width, g, b):
            # Mask padded lanes explicitly so mean/var never depend on padding contents.
            lane = jax.lax.broadcasted_iota(jnp.int32, v.shape, 1)
            m = lane < real_width
            inv = 1.0 / real_width
            vm = jnp.where(m, v, 0.0)
            mu = jnp.sum(vm, axis=-1, keepdims=True) * inv
            d = jnp.where(m, v - mu, 0.0)
            var = jnp.sum(d * d, axis=-1, keepdims=True) * inv
            return jnp.where(m, (v - mu) * jax.lax.rsqrt(var + eps) * g + b, 0.0)

        z = z_ref[...]
        a = jnp.dot(z.astype(jnp.bfloat16), w1_ref[...],
                    preferred_element_type=jnp.float32) + b1_ref[...]
        a = jnp.maximum(a, 0.0)                               # ReLU
        a = layer_norm(a, l1, g1_ref[...], be1_ref[...])
        # Dropout: eval-mode identity.
        a = jnp.dot(a.astype(jnp.bfloat16), w2_ref[...],
                    preferred_element_type=jnp.float32) + b2_ref[...]
        a = jnp.maximum(a, 0.0)
        a = layer_norm(a, l2, g2_ref[...], be2_ref[...])
        out_ref[...] = (jnp.dot(a.astype(jnp.bfloat16), wo_ref[...],
                                preferred_element_type=jnp.float32)
                        + bo_ref[...])


# ------------------------------------------------------------------ wrapper --
def gnn_model_base_forward(x, node_types, segw, params, *, tile_n=256):
    """forward(): init_batch -> readout -> fcout fused into one pallas_call.

    x:          (N, F) raw (pre-encoded) node features
    node_types: (N,)   integer node-type assignment
    segw:       (G, N) mean-pool weights (rows sum to 1 over each graph's nodes)
    returns logits (G, n_out), f32
    """
    x_np = np.asarray(jax.device_get(x), np.float32)
    types_np = np.asarray(jax.device_get(node_types)).astype(np.int64)
    segw_np = np.asarray(jax.device_get(segw), np.float32)

    n_nodes, n_feat = x_np.shape
    n_graphs = segw_np.shape[0]
    n_types = int(params["w_init"].shape[0])
    hidden = int(params["w_init"].shape[-1])
    l1 = int(params["w1"].shape[-1])
    l2 = int(params["w2"].shape[-1])
    n_out = int(params["wo"].shape[-1])

    f_pad = _round_up(n_feat + 1, LANE)        # +1 lane carries the constant 1.0 for the bias
    h_pad = _round_up(hidden, LANE)
    l1_pad = _round_up(l1, LANE)
    l2_pad = _round_up(l2, LANE)
    out_pad = _round_up(n_out, LANE)
    g_pad = _round_up(n_graphs, SUBLANE_BF16)

    bf16, f32 = jnp.bfloat16, jnp.float32

    # ---- group nodes by type so every tile hits exactly one W_t (K stays 128) ----
    perm = []          # original node index per padded slot, -1 for padding rows
    tile_types = []    # per grid tile: which type's W_init to use
    for t in range(n_types):
        idx = np.nonzero(types_np == t)[0]
        if idx.size == 0:
            continue
        n_slots = _round_up(int(idx.size), tile_n)
        perm.extend(idx.tolist())
        perm.extend([-1] * (n_slots - idx.size))
        tile_types.extend([t] * (n_slots // tile_n))
    perm = np.asarray(perm, np.int64)
    n_pad = perm.size
    num_tiles = n_pad // tile_n
    valid = perm >= 0

    # streamed node features (bf16): real features + a constant 1.0 bias lane
    x_p = np.zeros((n_pad, f_pad), np.float32)
    x_p[valid, :n_feat] = x_np[perm[valid]]
    x_p[valid, n_feat] = 1.0
    x_p = jnp.asarray(x_p).astype(bf16)

    # streamed mean-pool weights, permuted to the grouped node order, lane-dense (G, N) bf16
    segw_p = np.zeros((g_pad, n_pad), np.float32)
    segw_p[:n_graphs, np.nonzero(valid)[0]] = segw_np[:, perm[valid]]
    segw_p = jnp.asarray(segw_p).astype(bf16)

    # stacked per-type init weight with bias folded into row n_feat (bf16, fetched per tile)
    w_init_np = np.asarray(jax.device_get(params["w_init"]), np.float32)   # (T, F, H)
    b_init_np = np.asarray(jax.device_get(params["b_init"]), np.float32).reshape(n_types, hidden)
    wi = np.zeros((n_types, f_pad, h_pad), np.float32)
    wi[:, :n_feat, :hidden] = w_init_np
    wi[:, n_feat, :hidden] = b_init_np
    wi = jnp.asarray(wi).astype(bf16)

    # fcout parameters (weights bf16 into the MXU, biases / LayerNorm params f32 on the VPU)
    w1 = _pad2(params["w1"], h_pad, l1_pad, bf16)
    b1 = _pad2(params["b1"], 1, l1_pad, f32)
    g1 = _pad2(params["g1"], 1, l1_pad, f32)
    be1 = _pad2(params["be1"], 1, l1_pad, f32)
    w2 = _pad2(params["w2"], l1_pad, l2_pad, bf16)
    b2 = _pad2(params["b2"], 1, l2_pad, f32)
    g2 = _pad2(params["g2"], 1, l2_pad, f32)
    be2 = _pad2(params["be2"], 1, l2_pad, f32)
    wo = _pad2(params["wo"], l2_pad, out_pad, bf16)
    bo = _pad2(params["bo"], 1, out_pad, f32)

    tile_types_arr = jnp.asarray(tile_types, jnp.int32)

    kernel = functools.partial(fused_gnn_kernel, l1=l1, l2=l2, eps=1e-5)

    flops = (2 * n_pad * f_pad * h_pad                              # init matmul
             + 2 * n_pad * g_pad * h_pad                            # readout reduction
             + 2 * g_pad * (h_pad * l1_pad + l1_pad * l2_pad + l2_pad * out_pad))
    bytes_accessed = (x_p.size * 2 + segw_p.size * 2 + wi.size * 2
                      + w1.size * 2 + w2.size * 2 + wo.size * 2
                      + g_pad * out_pad * 4)

    out = pl.pallas_call(
        kernel,
        out_shape=jax.ShapeDtypeStruct((g_pad, out_pad), f32),
        grid_spec=pltpu.PrefetchScalarGridSpec(
            num_scalar_prefetch=1,               # tile -> node-type id table (SMEM)
            grid=(num_tiles,),
            in_specs=[
                # streamed per-tile tensors
                pl.BlockSpec((tile_n, f_pad), lambda i, tt: (i, 0)),          # x tile
                pl.BlockSpec((g_pad, tile_n), lambda i, tt: (0, i)),          # segw tile
                # per-type init weight, selected by the prefetched tile type id
                pl.BlockSpec((None, f_pad, h_pad), lambda i, tt: (tt[i], 0, 0)),
                # resident fcout parameters (constant index -> fetched once)
                pl.BlockSpec((h_pad, l1_pad), lambda i, tt: (0, 0)),          # w1
                pl.BlockSpec((1, l1_pad), lambda i, tt: (0, 0)),              # b1
                pl.BlockSpec((1, l1_pad), lambda i, tt: (0, 0)),              # g1
                pl.BlockSpec((1, l1_pad), lambda i, tt: (0, 0)),              # be1
                pl.BlockSpec((l1_pad, l2_pad), lambda i, tt: (0, 0)),         # w2
                pl.BlockSpec((1, l2_pad), lambda i, tt: (0, 0)),              # b2
                pl.BlockSpec((1, l2_pad), lambda i, tt: (0, 0)),              # g2
                pl.BlockSpec((1, l2_pad), lambda i, tt: (0, 0)),              # be2
                pl.BlockSpec((l2_pad, out_pad), lambda i, tt: (0, 0)),        # wo
                pl.BlockSpec((1, out_pad), lambda i, tt: (0, 0)),             # bo
            ],
            out_specs=pl.BlockSpec((g_pad, out_pad), lambda i, tt: (0, 0)),
            scratch_shapes=[pltpu.VMEM((g_pad, h_pad), jnp.float32)],         # resident z
        ),
        compiler_params=pltpu.CompilerParams(
            # node-tile axis is a reduction into the z accumulator -> arbitrary
            dimension_semantics=("arbitrary",),
        ),
        cost_estimate=pl.CostEstimate(flops=flops, transcendentals=0,
                                      bytes_accessed=bytes_accessed),
    )(tile_types_arr, x_p, segw_p, wi,
      w1, b1, g1, be1, w2, b2, g2, be2, wo, bo)

    # Slice off padded graphs / padded classes before anything downstream (argmax-safe).
    return out[:n_graphs, :n_out]


def pred_from_output(logits):
    # output.max(dim=1, keepdim=True)[1]; logits already sliced to real classes.
    return jnp.argmax(logits, axis=1)[:, None]


# --------------------------------------------------------------------- main --
if __name__ == "__main__":
    N_NODES = 600       # nodes in the batched graph (exercises per-type tile padding)
    N_TYPES = 2         # node types (tables)
    N_FEAT = 8          # raw (encoded) feature dim per node
    HIDDEN = 32         # hidden_dim
    N_GRAPHS = 4        # graphs in the batch
    N_OUT = 4           # db_info['task']['n_classes']
    LAYER_SIZES = [32, 16]  # fcout_layer_sizes = [1.0, 0.5] * hidden_dim

    key = jax.random.PRNGKey(0)
    ks = jax.random.split(key, 12)

    # node features and per-node type assignment
    x = jax.random.normal(ks[0], (N_NODES, N_FEAT), jnp.float32)
    node_types = jnp.arange(N_NODES) % N_TYPES

    # graph membership: mean-pool readout weights (G, N)
    graph_ids = jnp.repeat(jnp.arange(N_GRAPHS), N_NODES // N_GRAPHS)
    seg_onehot = jax.nn.one_hot(graph_ids, N_GRAPHS, dtype=jnp.float32).T   # (G, N)
    segw = seg_onehot / jnp.sum(seg_onehot, axis=1, keepdims=True)

    # deterministic parameters (synthetic init, not a checkpoint)
    params = {
        # per-node-type initializer: Linear(F -> HIDDEN)
        "w_init": jax.random.normal(ks[1], (N_TYPES, N_FEAT, HIDDEN), jnp.float32) * 0.1,
        "b_init": jax.random.normal(ks[2], (N_TYPES, 1, HIDDEN), jnp.float32) * 0.01,
        # fcout layer 1: Linear(HIDDEN -> 32) + LayerNorm(32)
        "w1": jax.random.normal(ks[3], (HIDDEN, LAYER_SIZES[0]), jnp.float32) * 0.1,
        "b1": jax.random.normal(ks[4], (1, LAYER_SIZES[0]), jnp.float32) * 0.01,
        "g1": jnp.ones((1, LAYER_SIZES[0]), jnp.float32),
        "be1": jnp.zeros((1, LAYER_SIZES[0]), jnp.float32),
        # fcout layer 2: Linear(32 -> 16) + LayerNorm(16)
        "w2": jax.random.normal(ks[5], (LAYER_SIZES[0], LAYER_SIZES[1]), jnp.float32) * 0.1,
        "b2": jax.random.normal(ks[6], (1, LAYER_SIZES[1]), jnp.float32) * 0.01,
        "g2": jnp.ones((1, LAYER_SIZES[1]), jnp.float32),
        "be2": jnp.zeros((1, LAYER_SIZES[1]), jnp.float32),
        # final Linear(16 -> n_out)
        "wo": jax.random.normal(ks[7], (LAYER_SIZES[1], N_OUT), jnp.float32) * 0.1,
        "bo": jax.random.normal(ks[8], (1, N_OUT), jnp.float32) * 0.01,
    }

    logits = jax.block_until_ready(
        gnn_model_base_forward(x, node_types, segw, params, tile_n=256))
    preds = jax.block_until_ready(pred_from_output(logits))

    # ---- plain-JAX reference mirroring the kernel's bf16-into-MXU / f32-accum numerics ----
    bf16 = jnp.bfloat16
    xb = x.astype(bf16)
    type_mask = jax.nn.one_hot(node_types, N_TYPES, dtype=jnp.float32)      # (N, T)
    h_ref = jnp.zeros((N_NODES, HIDDEN), jnp.float32)
    for t in range(N_TYPES):
        ht = jnp.dot(xb, params["w_init"][t].astype(bf16),
                     preferred_element_type=jnp.float32)
        ht = ht + params["b_init"][t].astype(bf16).astype(jnp.float32)
        h_ref = h_ref + type_mask[:, t:t + 1] * ht
    z_ref = jnp.dot(segw.astype(bf16), h_ref.astype(bf16),
                    preferred_element_type=jnp.float32)

    def ln(v, g, b, eps=1e-5):
        mu = jnp.mean(v, axis=-1, keepdims=True)
        var = jnp.mean((v - mu) ** 2, axis=-1, keepdims=True)
        return (v - mu) * jax.lax.rsqrt(var + eps) * g + b

    r = jnp.dot(z_ref.astype(bf16), params["w1"].astype(bf16),
                preferred_element_type=jnp.float32) + params["b1"]
    r = jnp.maximum(r, 0.0)
    r = ln(r, params["g1"], params["be1"])
    r = jnp.dot(r.astype(bf16), params["w2"].astype(bf16),
                preferred_element_type=jnp.float32) + params["b2"]
    r = jnp.maximum(r, 0.0)
    r = ln(r, params["g2"], params["be2"])
    logits_ref = jnp.dot(r.astype(bf16), params["wo"].astype(bf16),
                         preferred_element_type=jnp.float32) + params["bo"]

    assert logits.shape == (N_GRAPHS, N_OUT)
    assert preds.shape == (N_GRAPHS, 1)
    assert jnp.allclose(logits, logits_ref, atol=1e-2, rtol=1e-2), (
        float(jnp.max(jnp.abs(logits - logits_ref))))
    print("KERNEL_OK")
</pallas_src>

<mosaic_0001>
module attributes {stable_mosaic.version = 11 : i64} {
  func.func @fused_gnn_kernel(%arg0: i32, %arg1: memref<4xi32, #tpu.memory_space<smem>>, %arg2: memref<256x128xbf16, #tpu.memory_space<vmem>>, %arg3: memref<16x256xbf16, #tpu.memory_space<vmem>>, %arg4: memref<1x128x128xbf16, #tpu.memory_space<vmem>>, %arg5: memref<128x128xbf16, #tpu.memory_space<vmem>>, %arg6: memref<1x128xf32, #tpu.memory_space<vmem>>, %arg7: memref<1x128xf32, #tpu.memory_space<vmem>>, %arg8: memref<1x128xf32, #tpu.memory_space<vmem>>, %arg9: memref<128x128xbf16, #tpu.memory_space<vmem>>, %arg10: memref<1x128xf32, #tpu.memory_space<vmem>>, %arg11: memref<1x128xf32, #tpu.memory_space<vmem>>, %arg12: memref<1x128xf32, #tpu.memory_space<vmem>>, %arg13: memref<128x128xbf16, #tpu.memory_space<vmem>>, %arg14: memref<1x128xf32, #tpu.memory_space<vmem>>, %arg15: memref<16x128xf32, #tpu.memory_space<vmem>>, %arg16: memref<16x128xf32, #tpu.memory_space<vmem>>) attributes {dimension_semantics = [#tpu.dimension_semantics<arbitrary>], iteration_bounds = array<i64: 4>, scalar_prefetch = 1 : i64, scratch_operands = 1 : i64, tpu.core_type = #tpu.core_type<tc>, window_params = [{transform_indices = @transform_0, window_bounds = array<i64: 256, 128>}, {transform_indices = @transform_1, window_bounds = array<i64: 16, 256>}, {transform_indices = @transform_2, window_bounds = array<i64: 1, 128, 128>}, {pipeline_mode = #tpu.pipeline_mode<synchronous>, transform_indices = @transform_3, window_bounds = array<i64: 128, 128>}, {pipeline_mode = #tpu.pipeline_mode<synchronous>, transform_indices = @transform_4, window_bounds = array<i64: 1, 128>}, {pipeline_mode = #tpu.pipeline_mode<synchronous>, transform_indices = @transform_5, window_bounds = array<i64: 1, 128>}, {pipeline_mode = #tpu.pipeline_mode<synchronous>, transform_indices = @transform_6, window_bounds = array<i64: 1, 128>}, {pipeline_mode = #tpu.pipeline_mode<synchronous>, transform_indices = @transform_7, window_bounds = array<i64: 128, 128>}, {pipeline_mode = #tpu.pipeline_mode<synchronous>, transform_indices = @transform_8, window_bounds = array<i64: 1, 128>}, {pipeline_mode = #tpu.pipeline_mode<synchronous>, transform_indices = @transform_9, window_bounds = array<i64: 1, 128>}, {pipeline_mode = #tpu.pipeline_mode<synchronous>, transform_indices = @transform_10, window_bounds = array<i64: 1, 128>}, {pipeline_mode = #tpu.pipeline_mode<synchronous>, transform_indices = @transform_11, window_bounds = array<i64: 128, 128>}, {pipeline_mode = #tpu.pipeline_mode<synchronous>, transform_indices = @transform_12, window_bounds = array<i64: 1, 128>}, {pipeline_mode = #tpu.pipeline_mode<synchronous>, transform_indices = @transform_13, window_bounds = array<i64: 16, 128>}]} {
    %c0_i32 = arith.constant 0 : i32
    %0 = arith.cmpi eq, %arg0, %c0_i32 : i32
    %1 = arith.extui %0 : i1 to i32
    %c0_i32_0 = arith.constant 0 : i32
    %2 = arith.cmpi ne, %1, %c0_i32_0 : i32
    scf.if %2 {
      %cst_13 = arith.constant 0.000000e+00 : f32
      %16 = vector.broadcast %cst_13 : f32 to vector<16x128xf32>
      %c0_14 = arith.constant 0 : index
      %c0_15 = arith.constant 0 : index
      %17 = vector.load %arg16[%c0_14, %c0_15] : memref<16x128xf32, #tpu.memory_space<vmem>>, vector<16x128xf32>
      tpu.vector_store %arg16[%c0_14, %c0_15], %16 {strides = array<i32>} : memref<16x128xf32, #tpu.memory_space<vmem>>, vector<16x128xf32>,
    } else {
    }
    %c0 = arith.constant 0 : index
    %c0_1 = arith.constant 0 : index
    %3 = vector.load %arg2[%c0, %c0_1] : memref<256x128xbf16, #tpu.memory_space<vmem>>, vector<256x128xbf16>
    %c0_2 = arith.constant 0 : index
    %c0_3 = arith.constant 0 : index
    %c0_4 = arith.constant 0 : index
    %4 = vector.load %arg4[%c0_2, %c0_3, %c0_4] : memref<1x128x128xbf16, #tpu.memory_space<vmem>>, vector<1x128x128xbf16>
    %5 = vector.shape_cast %4 : vector<1x128x128xbf16> to vector<128x128xbf16>
    %cst = arith.constant dense<0.000000e+00> : vector<256x128xf32>
    %6 = tpu.matmul %3, %5, %cst {dimension_numbers = #tpu.dot_dimension_numbers<[1], [0], [0], [1], [0, 0, 1, 1], [], []>} : vector<256x128xbf16>, vector<128x128xbf16>, vector<256x128xf32> -> vector<256x128xf32>
    %c0_5 = arith.constant 0 : index
    %c0_6 = arith.constant 0 : index
    %7 = vector.load %arg16[%c0_5, %c0_6] : memref<16x128xf32, #tpu.memory_space<vmem>>, vector<16x128xf32>
    %c0_7 = arith.constant 0 : index
    %c0_8 = arith.constant 0 : index
    %8 = vector.load %arg3[%c0_7, %c0_8] : memref<16x256xbf16, #tpu.memory_space<vmem>>, vector<16x256xbf16>
    %9 = arith.truncf %6 : vector<256x128xf32> to vector<256x128xbf16>
    %cst_9 = arith.constant dense<0.000000e+00> : vector<16x128xf32>
    %10 = tpu.matmul %8, %9, %cst_9 {dimension_numbers = #tpu.dot_dimension_numbers<[1], [0], [0], [1], [0, 0, 1, 1], [], []>} : vector<16x256xbf16>, vector<256x128xbf16>, vector<16x128xf32> -> vector<16x128xf32>
    %11 = arith.addf %7, %10 : vector<16x128xf32>
    %c0_10 = arith.constant 0 : index
    %c0_11 = arith.constant 0 : index
    %12 = vector.load %arg16[%c0_10, %c0_11] : memref<16x128xf32, #tpu.memory_space<vmem>>, vector<16x128xf32>
    tpu.vector_store %arg16[%c0_10, %c0_11], %11 {strides = array<i32>} : memref<16x128xf32, #tpu.memory_space<vmem>>, vector<16x128xf32>,
    %c3_i32 = arith.constant 3 : i32
    %13 = arith.cmpi eq, %arg0, %c3_i32 : i32
    %14 = arith.extui %13 : i1 to i32
    %c0_i32_12 = arith.constant 0 : i32
    %15 = arith.cmpi ne, %14, %c0_i32_12 : i32
    scf.if %15 {
      %c0_13 = arith.constant 0 : index
      %c0_14 = arith.constant 0 : index
      %16 = vector.load %arg16[%c0_13, %c0_14] : memref<16x128xf32, #tpu.memory_space<vmem>>, vector<16x128xf32>
      %17 = arith.truncf %16 : vector<16x128xf32> to vector<16x128xbf16>
      %c0_15 = arith.constant 0 : index
      %c0_16 = arith.constant 0 : index
      %18 = vector.load %arg5[%c0_15, %c0_16] : memref<128x128xbf16, #tpu.memory_space<vmem>>, vector<128x128xbf16>
      %cst_17 = arith.constant dense<0.000000e+00> : vector<16x128xf32>
      %19 = tpu.matmul %17, %18, %cst_17 {dimension_numbers = #tpu.dot_dimension_numbers<[1], [0], [0], [1], [0, 0, 1, 1], [], []>} : vector<16x128xbf16>, vector<128x128xbf16>, vector<16x128xf32> -> vector<16x128xf32>
      %c0_18 = arith.constant 0 : index
      %c0_19 = arith.constant 0 : index
      %20 = vector.load %arg6[%c0_18, %c0_19] : memref<1x128xf32, #tpu.memory_space<vmem>>, vector<1x128xf32>
      %21 = vector.broadcast %20 : vector<1x128xf32> to vector<16x128xf32>
      %22 = arith.addf %19, %21 : vector<16x128xf32>
      %cst_20 = arith.constant 0.000000e+00 : f32
      %23 = vector.broadcast %cst_20 : f32 to vector<16x128xf32>
      %24 = arith.maximumf %22, %23 : vector<16x128xf32>
      %c0_21 = arith.constant 0 : index
      %c0_22 = arith.constant 0 : index
      %25 = vector.load %arg7[%c0_21, %c0_22] : memref<1x128xf32, #tpu.memory_space<vmem>>, vector<1x128xf32>
      %c0_23 = arith.constant 0 : index
      %c0_24 = arith.constant 0 : index
      %26 = vector.load %arg8[%c0_23, %c0_24] : memref<1x128xf32, #tpu.memory_space<vmem>>, vector<1x128xf32>
      %27 = tpu.iota {dimensions = array<i32: 1>} : vector<16x128xi32>
      %c32_i32 = arith.constant 32 : i32
      %28 = vector.broadcast %c32_i32 : i32 to vector<16x128xi32>
      %29 = arith.cmpi slt, %27, %28 : vector<16x128xi32>
      %cst_25 = arith.constant 0.000000e+00 : f32
      %30 = vector.broadcast %cst_25 : f32 to vector<16x128xf32>
      %31 = arith.select %29, %24, %30 : vector<16x128xi1>, vector<16x128xf32>
      %cst_26 = arith.constant dense<0.000000e+00> : vector<16xf32>
      %32 = vector.multi_reduction <add>, %31, %cst_26 [1] : vector<16x128xf32> to vector<16xf32>
      %33 = vector.shape_cast %32 : vector<16xf32> to vector<16x1xf32>
      %cst_27 = arith.constant 3.125000e-02 : f32
      %34 = vector.broadcast %cst_27 : f32 to vector<16x1xf32>
      %35 = arith.mulf %33, %34 : vector<16x1xf32>
      %36 = vector.broadcast %35 : vector<16x1xf32> to vector<16x128xf32>
      %37 = arith.subf %24, %36 : vector<16x128xf32>
      %cst_28 = arith.constant 0.000000e+00 : f32
      %38 = vector.broadcast %cst_28 : f32 to vector<16x128xf32>
      %39 = arith.select %29, %37, %38 : vector<16x128xi1>, vector<16x128xf32>
      %40 = arith.mulf %39, %39 : vector<16x128xf32>
      %cst_29 = arith.constant dense<0.000000e+00> : vector<16xf32>
      %41 = vector.multi_reduction <add>, %40, %cst_29 [1] : vector<16x128xf32> to vector<16xf32>
      %42 = vector.shape_cast %41 : vector<16xf32> to vector<16x1xf32>
      %cst_30 = arith.constant 3.125000e-02 : f32
      %43 = vector.broadcast %cst_30 : f32 to vector<16x1xf32>
      %44 = arith.mulf %42, %43 : vector<16x1xf32>
      %45 = vector.broadcast %35 : vector<16x1xf32> to vector<16x128xf32>
      %46 = arith.subf %24, %45 : vector<16x128xf32>
      %cst_31 = arith.constant 9.99999974E-6 : f32
      %47 = vector.broadcast %cst_31 : f32 to vector<16x1xf32>
      %48 = arith.addf %44, %47 : vector<16x1xf32>
      %49 = math.rsqrt %48 : vector<16x1xf32>
      %50 = vector.broadcast %49 : vector<16x1xf32> to vector<16x128xf32>
      %51 = arith.mulf %46, %50 : vector<16x128xf32>
      %52 = vector.broadcast %25 : vector<1x128xf32> to vector<16x128xf32>
      %53 = arith.mulf %51, %52 : vector<16x128xf32>
      %54 = vector.broadcast %26 : vector<1x128xf32> to vector<16x128xf32>
      %55 = arith.addf %53, %54 : vector<16x128xf32>
      %cst_32 = arith.constant 0.000000e+00 : f32
      %56 = vector.broadcast %cst_32 : f32 to vector<16x128xf32>
      %57 = arith.select %29, %55, %56 : vector<16x128xi1>, vector<16x128xf32>
      %58 = arith.truncf %57 : vector<16x128xf32> to vector<16x128xbf16>
      %c0_33 = arith.constant 0 : index
      %c0_34 = arith.constant 0 : index
      %59 = vector.load %arg9[%c0_33, %c0_34] : memref<128x128xbf16, #tpu.memory_space<vmem>>, vector<128x128xbf16>
      %cst_35 = arith.constant dense<0.000000e+00> : vector<16x128xf32>
      %60 = tpu.matmul %58, %59, %cst_35 {dimension_numbers = #tpu.dot_dimension_numbers<[1], [0], [0], [1], [0, 0, 1, 1], [], []>} : vector<16x128xbf16>, vector<128x128xbf16>, vector<16x128xf32> -> vector<16x128xf32>
      %c0_36 = arith.constant 0 : index
      %c0_37 = arith.constant 0 : index
      %61 = vector.load %arg10[%c0_36, %c0_37] : memref<1x128xf32, #tpu.memory_space<vmem>>, vector<1x128xf32>
      %62 = vector.broadcast %61 : vector<1x128xf32> to vector<16x128xf32>
      %63 = arith.addf %60, %62 : vector<16x128xf32>
      %cst_38 = arith.constant 0.000000e+00 : f32
      %64 = vector.broadcast %cst_38 : f32 to vector<16x128xf32>
      %65 = arith.maximumf %63, %64 : vector<16x128xf32>
      %c0_39 = arith.constant 0 : index
      %c0_40 = arith.constant 0 : index
      %66 = vector.load %arg11[%c0_39, %c0_40] : memref<1x128xf32, #tpu.memory_space<vmem>>, vector<1x128xf32>
      %c0_41 = arith.constant 0 : index
      %c0_42 = arith.constant 0 : index
      %67 = vector.load %arg12[%c0_41, %c0_42] : memref<1x128xf32, #tpu.memory_space<vmem>>, vector<1x128xf32>
      %68 = tpu.iota {dimensions = array<i32: 1>} : vector<16x128xi32>
      %c16_i32 = arith.constant 16 : i32
      %69 = vector.broadcast %c16_i32 : i32 to vector<16x128xi32>
      %70 = arith.cmpi slt, %68, %69 : vector<16x128xi32>
      %cst_43 = arith.constant 0.000000e+00 : f32
      %71 = vector.broadcast %cst_43 : f32 to vector<16x128xf32>
      %72 = arith.select %70, %65, %71 : vector<16x128xi1>, vector<16x128xf32>
      %cst_44 = arith.constant dense<0.000000e+00> : vector<16xf32>
      %73 = vector.multi_reduction <add>, %72, %cst_44 [1] : vector<16x128xf32> to vector<16xf32>
      %74 = vector.shape_cast %73 : vector<16xf32> to vector<16x1xf32>
      %cst_45 = arith.constant 6.250000e-02 : f32
      %75 = vector.broadcast %cst_45 : f32 to vector<16x1xf32>
      %76 = arith.mulf %74, %75 : vector<16x1xf32>
      %77 = vector.broadcast %76 : vector<16x1xf32> to vector<16x128xf32>
      %78 = arith.subf %65, %77 : vector<16x128xf32>
      %cst_46 = arith.constant 0.000000e+00 : f32
      %79 = vector.broadcast %cst_46 : f32 to vector<16x128xf32>
      %80 = arith.select %70, %78, %79 : vector<16x128xi1>, vector<16x128xf32>
      %81 = arith.mulf %80, %80 : vector<16x128xf32>
      %cst_47 = arith.constant dense<0.000000e+00> : vector<16xf32>
      %82 = vector.multi_reduction <add>, %81, %cst_47 [1] : vector<16x128xf32> to vector<16xf32>
      %83 = vector.shape_cast %82 : vector<16xf32> to vector<16x1xf32>
      %cst_48 = arith.constant 6.250000e-02 : f32
      %84 = vector.broadcast %cst_48 : f32 to vector<16x1xf32>
      %85 = arith.mulf %83, %84 : vector<16x1xf32>
      %86 = vector.broadcast %76 : vector<16x1xf32> to vector<16x128xf32>
      %87 = arith.subf %65, %86 : vector<16x128xf32>
      %cst_49 = arith.constant 9.99999974E-6 : f32
      %88 = vector.broadcast %cst_49 : f32 to vector<16x1xf32>
      %89 = arith.addf %85, %88 : vector<16x1xf32>
      %90 = math.rsqrt %89 : vector<16x1xf32>
      %91 = vector.broadcast %90 : vector<16x1xf32> to vector<16x128xf32>
      %92 = arith.mulf %87, %91 : vector<16x128xf32>
      %93 = vector.broadcast %66 : vector<1x128xf32> to vector<16x128xf32>
      %94 = arith.mulf %92, %93 : vector<16x128xf32>
      %95 = vector.broadcast %67 : vector<1x128xf32> to vector<16x128xf32>
      %96 = arith.addf %94, %95 : vector<16x128xf32>
      %cst_50 = arith.constant 0.000000e+00 : f32
      %97 = vector.broadcast %cst_50 : f32 to vector<16x128xf32>
      %98 = arith.select %70, %96, %97 : vector<16x128xi1>, vector<16x128xf32>
      %99 = arith.truncf %98 : vector<16x128xf32> to vector<16x128xbf16>
      %c0_51 = arith.constant 0 : index
      %c0_52 = arith.constant 0 : index
      %100 = vector.load %arg13[%c0_51, %c0_52] : memref<128x128xbf16, #tpu.memory_space<vmem>>, vector<128x128xbf16>
      %cst_53 = arith.constant dense<0.000000e+00> : vector<16x128xf32>
      %101 = tpu.matmul %99, %100, %cst_53 {dimension_numbers = #tpu.dot_dimension_numbers<[1], [0], [0], [1], [0, 0, 1, 1], [], []>} : vector<16x128xbf16>, vector<128x128xbf16>, vector<16x128xf32> -> vector<16x128xf32>
      %c0_54 = arith.constant 0 : index
      %c0_55 = arith.constant 0 : index
      %102 = vector.load %arg14[%c0_54, %c0_55] : memref<1x128xf32, #tpu.memory_space<vmem>>, vector<1x128xf32>
      %103 = vector.broadcast %102 : vector<1x128xf32> to vector<16x128xf32>
      %104 = arith.addf %101, %103 : vector<16x128xf32>
      %c0_56 = arith.constant 0 : index
      %c0_57 = arith.constant 0 : index
      %105 = vector.load %arg15[%c0_56, %c0_57] : memref<16x128xf32, #tpu.memory_space<vmem>>, vector<16x128xf32>
      tpu.vector_store %arg15[%c0_56, %c0_57], %104 {strides = array<i32>} : memref<16x128xf32, #tpu.memory_space<vmem>>, vector<16x128xf32>,
    } else {
    }
    return
  }
  func.func @transform_0(%arg0: i32, %arg1: memref<4xi32, #tpu.memory_space<smem>>) -> (i32, i32) {
    %c0_i32 = arith.constant 0 : i32
    %c0_i32_0 = arith.constant 0 : i32
    return %arg0, %c0_i32 : i32, i32
  }
  func.func @transform_1(%arg0: i32, %arg1: memref<4xi32, #tpu.memory_space<smem>>) -> (i32, i32) {
    %c0_i32 = arith.constant 0 : i32
    %c0_i32_0 = arith.constant 0 : i32
    return %c0_i32, %arg0 : i32, i32
  }
  func.func @transform_2(%arg0: i32, %arg1: memref<4xi32, #tpu.memory_space<smem>>) -> (i32, i32, i32) {
    %0 = arith.index_cast %arg0 : i32 to index
    %1 = memref.load %arg1[%0] : memref<4xi32, #tpu.memory_space<smem>>
    %c0_i32 = arith.constant 0 : i32
    %c0_i32_0 = arith.constant 0 : i32
    %c0_i32_1 = arith.constant 0 : i32
    return %1, %c0_i32, %c0_i32_0 : i32, i32, i32
  }
  func.func @transform_3(%arg0: i32, %arg1: memref<4xi32, #tpu.memory_space<smem>>) -> (i32, i32) {
    %c0_i32 = arith.constant 0 : i32
    %c0_i32_0 = arith.constant 0 : i32
    %c0_i32_1 = arith.constant 0 : i32
    return %c0_i32, %c0_i32_0 : i32, i32
  }
  func.func @transform_4(%arg0: i32, %arg1: memref<4xi32, #tpu.memory_space<smem>>) -> (i32, i32) {
    %c0_i32 = arith.constant 0 : i32
    %c0_i32_0 = arith.constant 0 : i32
    %c0_i32_1 = arith.constant 0 : i32
    return %c0_i32, %c0_i32_0 : i32, i32
  }
  func.func @transform_5(%arg0: i32, %arg1: memref<4xi32, #tpu.memory_space<smem>>) -> (i32, i32) {
    %c0_i32 = arith.constant 0 : i32
    %c0_i32_0 = arith.constant 0 : i32
    %c0_i32_1 = arith.constant 0 : i32
    return %c0_i32, %c0_i32_0 : i32, i32
  }
  func.func @transform_6(%arg0: i32, %arg1: memref<4xi32, #tpu.memory_space<smem>>) -> (i32, i32) {
    %c0_i32 = arith.constant 0 : i32
    %c0_i32_0 = arith.constant 0 : i32
    %c0_i32_1 = arith.constant 0 : i32
    return %c0_i32, %c0_i32_0 : i32, i32
  }
  func.func @transform_7(%arg0: i32, %arg1: memref<4xi32, #tpu.memory_space<smem>>) -> (i32, i32) {
    %c0_i32 = arith.constant 0 : i32
    %c0_i32_0 = arith.constant 0 : i32
    %c0_i32_1 = arith.constant 0 : i32
    return %c0_i32, %c0_i32_0 : i32, i32
  }
  func.func @transform_8(%arg0: i32, %arg1: memref<4xi32, #tpu.memory_space<smem>>) -> (i32, i32) {
    %c0_i32 = arith.constant 0 : i32
    %c0_i32_0 = arith.constant 0 : i32
    %c0_i32_1 = arith.constant 0 : i32
    return %c0_i32, %c0_i32_0 : i32, i32
  }
  func.func @transform_9(%arg0: i32, %arg1: memref<4xi32, #tpu.memory_space<smem>>) -> (i32, i32) {
    %c0_i32 = arith.constant 0 : i32
    %c0_i32_0 = arith.constant 0 : i32
    %c0_i32_1 = arith.constant 0 : i32
    return %c0_i32, %c0_i32_0 : i32, i32
  }
  func.func @transform_10(%arg0: i32, %arg1: memref<4xi32, #tpu.memory_space<smem>>) -> (i32, i32) {
    %c0_i32 = arith.constant 0 : i32
    %c0_i32_0 = arith.constant 0 : i32
    %c0_i32_1 = arith.constant 0 : i32
    return %c0_i32, %c0_i32_0 : i32, i32
  }
  func.func @transform_11(%arg0: i32, %arg1: memref<4xi32, #tpu.memory_space<smem>>) -> (i32, i32) {
    %c0_i32 = arith.constant 0 : i32
    %c0_i32_0 = arith.constant 0 : i32
    %c0_i32_1 = arith.constant 0 : i32
    return %c0_i32, %c0_i32_0 : i32, i32
  }
  func.func @transform_12(%arg0: i32, %arg1: memref<4xi32, #tpu.memory_space<smem>>) -> (i32, i32) {
    %c0_i32 = arith.constant 0 : i32
    %c0_i32_0 = arith.constant 0 : i32
    %c0_i32_1 = arith.constant 0 : i32
    return %c0_i32, %c0_i32_0 : i32, i32
  }
  func.func @transform_13(%arg0: i32, %arg1: memref<4xi32, #tpu.memory_space<smem>>) -> (i32, i32) {
    %c0_i32 = arith.constant 0 : i32
    %c0_i32_0 = arith.constant 0 : i32
    %c0_i32_1 = arith.constant 0 : i32
    return %c0_i32, %c0_i32_0 : i32, i32
  }
}

</mosaic_0001>

<llo_original>
// kernel: tpu_custom_call.1
$region0: #{tpu_custom_call.1}
  #allocation0 [shape = 'u32[]', space=smem, size = 0x4, offset = 0x4, fixed_abs, tag = 'smem constant byte address 0x4 - core index']
  #allocation1 [shape = 'u32[72,128]{1,0:T(1,128)}', space=vmem, size = 0x9000, scoped, tag = 'internal scratch']
  #allocation2 [shape = 'f32[16,128]{1,0:T(8,128)}', space=vmem, size = 0x2000, scoped, tag = 'scratch operand']
  #allocation3 [shape = 's32[1]{0}', space=sflag, size = 0x4, scoped, tag = 'scoped memory for tpu_custom_call.1']
  #allocation4 [shape = 'u8[512]{0}', space=smem, size = 0x200, scoped, tag = 'prefetched SMEM operand 0']
  %s0 = inlined_call_operand.hbm [shape: s32[4], index: 0, kind: input, shape index: {}]
  %s1 = inlined_call_operand.hbm [shape: bf16[1024,128], index: 1, kind: input, shape index: {}]
  %s2 = inlined_call_operand.hbm [shape: bf16[16,1024], index: 2, kind: input, shape index: {}]
  %s3 = inlined_call_operand.hbm [shape: bf16[2,128,128], index: 3, kind: input, shape index: {}]
  %s4 = inlined_call_operand.hbm [shape: bf16[128,128], index: 4, kind: input, shape index: {}]
  %s5 = inlined_call_operand.vmem [shape: f32[1,128], index: 5, kind: input, shape index: {}]
  %s6 = inlined_call_operand.vmem [shape: f32[1,128], index: 6, kind: input, shape index: {}]
  %s7 = inlined_call_operand.vmem [shape: f32[1,128], index: 7, kind: input, shape index: {}]
  %s8 = inlined_call_operand.hbm [shape: bf16[128,128], index: 8, kind: input, shape index: {}]
  %s9 = inlined_call_operand.vmem [shape: f32[1,128], index: 9, kind: input, shape index: {}]
  %s10 = inlined_call_operand.vmem [shape: f32[1,128], index: 10, kind: input, shape index: {}]
  %s11 = inlined_call_operand.vmem [shape: f32[1,128], index: 11, kind: input, shape index: {}]
  %s12 = inlined_call_operand.hbm [shape: bf16[128,128], index: 12, kind: input, shape index: {}]
  %s13 = inlined_call_operand.vmem [shape: f32[1,128], index: 13, kind: input, shape index: {}]
  %s14 = inlined_call_operand.hbm [shape: f32[16,128], index: 14, kind: output, shape index: {}]
  %s15 = sld [smem:[#allocation0]]
  $region117: #{tpu_custom_call.1} parent=0
    _
  %s17 = ssub.s32 1, %s15
  %s18 = scalar_select 0, %s17, %s15
  %s20 = sshll.u32 %s0, 4
  %s21 = int_to_ptr.hbm [resolvable:$true] %s20
  %23 = dma.hbm_to_smem %s21, 16, [#allocation4], [#allocation3]
  %25 = dma.done [#allocation3], 16
  %26 = sfence
  $region1: #{tpu_custom_call.1} parent=0
    #allocation5 [shape = 'u8[131072]{0}', space=vmem, size = 0x20000, scoped, tag = 'input window, operand 1']
    #allocation6 [shape = 's32[2]{0}', space=sflag, size = 0x8, scoped, tag = 'scoped memory for tpu_custom_call.1']
    #allocation7 [shape = 's32[2]{0}', space=sflag, size = 0x8, scoped, tag = 'scoped memory for tpu_custom_call.1']
    #allocation8 [shape = 'u8[16384]{0}', space=vmem, size = 0x4000, scoped, tag = 'input window, operand 2']
    #allocation9 [shape = 's32[2]{0}', space=sflag, size = 0x8, scoped, tag = 'scoped memory for tpu_custom_call.1']
    #allocation10 [shape = 'u8[65536]{0}', space=vmem, size = 0x10000, scoped, tag = 'input window, operand 3']
    #allocation11 [shape = 'u8[32768]{0}', space=vmem, size = 0x8000, scoped, tag = 'input window, operand 4, single buffered']
    #allocation12 [shape = 's32[1]{0}', space=sflag, size = 0x4, scoped, tag = 'scoped memory for tpu_custom_call.1']
    #allocation13 [shape = 'u8[32768]{0}', space=vmem, size = 0x8000, scoped, tag = 'input window, operand 8, single buffered']
    #allocation14 [shape = 'u8[32768]{0}', space=vmem, size = 0x8000, scoped, tag = 'input window, operand 12, single buffered']
    #allocation15 [shape = 's32[1]{0}', space=sflag, size = 0x4, scoped, tag = 'scoped memory for tpu_custom_call.1']
    #allocation16 [shape = 'u8[8192]{0}', space=vmem, size = 0x2000, scoped, tag = 'output window, operand 0, single buffered']
    %27 = vsyncpa [#allocation6], 0
    %s28 = scalar_lea.sflag [#allocation6], 1
    %29 = vsyncpa %s28, 0
    %30 = vsyncpa [#allocation9], 0
    %s31 = scalar_lea.sflag [#allocation9], 1
    %32 = vsyncpa %s31, 0
    %33 = vsyncpa [#allocation12], 0
    %34 = vsyncpa [#allocation15], 0
    %35 = vsyncpa [#allocation7], 0
    loop: start=0, step=1, limit=6
    $region2: #{tpu_custom_call.1} parent=1 // loop_pre_header
      _
    $region3: #{tpu_custom_call.1} parent=1 // loop_header
      %s37 = sphi 0, %s41
      %p38 = scmp.ge.s32.totalorder %s37, 6
      %s47 = sphi 0, %s49
      %s50 = sphi 0, %s47
      %s51 = sphi 0, %s50
      %s67 = sphi 0, %s51
      %s73 = sphi 0, %s75
      %s76 = sphi 0, %s73
      %s77 = sphi 0, %s76
      %s93 = sphi 0, %s77
      %s101 = sphi 0, %s103
      %s104 = sphi 0, %s101
      %s105 = sphi 0, %s104
      %s121 = sphi 0, %s105
      %s125 = sphi 0, %s125
      %s127 = sphi 0, %s125
      %s128 = sphi 0, %s127
      %s142 = sphi 0, %s128
      %s146 = sphi 0, %s146
      %s148 = sphi 0, %s146
      %s149 = sphi 0, %s148
      %s163 = sphi 0, %s149
      %s167 = sphi 0, %s167
      %s169 = sphi 0, %s167
      %s170 = sphi 0, %s169
      %s184 = sphi 0, %s170
      %s188 = sphi 0, %s188
      %s190 = sphi 0, %s188
      %s191 = sphi 0, %s190
      %s205 = sphi 0, %s191
      %s209 = sphi 0, %s209
      %s211 = sphi 0, %s209
      %s212 = sphi 0, %s211
      %s226 = sphi 0, %s212
      %s230 = sphi 0, %s230
      %s232 = sphi 0, %s230
      %s233 = sphi 0, %s232
      %s247 = sphi 0, %s233
      %s251 = sphi 0, %s251
      %s253 = sphi 0, %s251
      %s254 = sphi 0, %s253
      %s268 = sphi 0, %s254
      %s272 = sphi 0, %s272
      %s274 = sphi 0, %s272
      %s275 = sphi 0, %s274
      %s289 = sphi 0, %s275
      %s293 = sphi 0, %s293
      %s295 = sphi 0, %s293
      %s296 = sphi 0, %s295
      %s310 = sphi 0, %s296
      %s314 = sphi 0, %s314
      %s316 = sphi 0, %s314
      %s317 = sphi 0, %s316
      %s331 = sphi 0, %s317
      %s335 = sphi 0, %s335
      %s337 = sphi 0, %s335
      %s338 = sphi 0, %s337
      %s352 = sphi 0, %s338
    $region4: #{tpu_custom_call.1} parent=1 // loop_header_branch
      %40 = sbr.rel (%p38) target = $region8
    $region5: #{tpu_custom_call.1} parent=1 // loop_body
      %s42 = ssub.s32 %s37, 1
      %s43 = ssub.s32 %s37, 2
      %s44 = sadd.s32 %s37, 1
      %s45 = ssub.s32 %s37, %s44
      %p46 = scmp.eq.s32.totalorder %s45, 0
      %s48 = sadd.s32 %s47, 1
      %s49 = scalar_select %p46, %s47, %s48
      %p52 = pneg %p46
      %p53 = scmp.eq.s32.totalorder %s37, 3
      %p54 = por %p52, %p53
      %p55 = scmp.ne.s32.totalorder %s47, %s50
      %p56 = scmp.eq.s32.totalorder %s37, 0
      %p57 = por %p55, %p56
      %p58 = scmp.ne.s32.totalorder %s47, %s50
      %p59 = scmp.eq.s32.totalorder %s42, 3
      %p60 = por %p58, %p59
      %p61 = scmp.ne.s32.totalorder %s50, %s51
      %p62 = scmp.eq.s32.totalorder %s42, 0
      %p63 = por %p61, %p62
      %p64 = scmp.ne.s32.totalorder %s50, %s51
      %p65 = scmp.eq.s32.totalorder %s43, 3
      %p66 = por %p64, %p65
      %p68 = scmp.ne.s32.totalorder %s51, %s67
      %p69 = scmp.eq.s32.totalorder %s43, 0
      %p70 = por %p68, %p69
      %s71 = ssub.s32 %s37, %s44
      %p72 = scmp.eq.s32.totalorder %s71, 0
      %s74 = sadd.s32 %s73, 1
      %s75 = scalar_select %p72, %s73, %s74
      %p78 = pneg %p72
      %p79 = scmp.eq.s32.totalorder %s37, 3
      %p80 = por %p78, %p79
      %p81 = scmp.ne.s32.totalorder %s73, %s76
      %p82 = scmp.eq.s32.totalorder %s37, 0
      %p83 = por %p81, %p82
      %p84 = scmp.ne.s32.totalorder %s73, %s76
      %p85 = scmp.eq.s32.totalorder %s42, 3
      %p86 = por %p84, %p85
      %p87 = scmp.ne.s32.totalorder %s76, %s77
      %p88 = scmp.eq.s32.totalorder %s42, 0
      %p89 = por %p87, %p88
      %p90 = scmp.ne.s32.totalorder %s76, %s77
      %p91 = scmp.eq.s32.totalorder %s43, 3
      %p92 = por %p90, %p91
      %p94 = scmp.ne.s32.totalorder %s77, %s93
      %p95 = scmp.eq.s32.totalorder %s43, 0
      %p96 = por %p94, %p95
      %s97 = sld [smem:[#allocation4 + %s37]]
      %s98 = sld [smem:[#allocation4 + %s44]]
      %s99 = ssub.s32 %s97, %s98
      %p100 = scmp.eq.s32.totalorder %s99, 0
      %s102 = sadd.s32 %s101, 1
      %s103 = scalar_select %p100, %s101, %s102
      %p106 = pneg %p100
      %p107 = scmp.eq.s32.totalorder %s37, 3
      %p108 = por %p106, %p107
      %p109 = scmp.ne.s32.totalorder %s101, %s104
      %p110 = scmp.eq.s32.totalorder %s37, 0
      %p111 = por %p109, %p110
      %p112 = scmp.ne.s32.totalorder %s101, %s104
      %p113 = scmp.eq.s32.totalorder %s42, 3
      %p114 = por %p112, %p113
      %p115 = scmp.ne.s32.totalorder %s104, %s105
      %p116 = scmp.eq.s32.totalorder %s42, 0
      %p117 = por %p115, %p116
      %p118 = scmp.ne.s32.totalorder %s104, %s105
      %p119 = scmp.eq.s32.totalorder %s43, 3
      %p120 = por %p118, %p119
      %p122 = scmp.ne.s32.totalorder %s105, %s121
      %p123 = scmp.eq.s32.totalorder %s43, 0
      %p124 = por %p122, %p123
      %s126 = sadd.s32 %s125, 1
      %p129 = scmp.eq.s32.totalorder %s37, 3
      %p130 = scmp.ne.s32.totalorder %s125, %s127
      %p131 = scmp.eq.s32.totalorder %s37, 0
      %p132 = por %p130, %p131
      %p133 = scmp.ne.s32.totalorder %s125, %s127
      %p134 = scmp.eq.s32.totalorder %s42, 3
      %p135 = por %p133, %p134
      %p136 = scmp.ne.s32.totalorder %s127, %s128
      %p137 = scmp.eq.s32.totalorder %s42, 0
      %p138 = por %p136, %p137
      %p139 = scmp.ne.s32.totalorder %s127, %s128
      %p140 = scmp.eq.s32.totalorder %s43, 3
      %p141 = por %p139, %p140
      %p143 = scmp.ne.s32.totalorder %s128, %s142
      %p144 = scmp.eq.s32.totalorder %s43, 0
      %p145 = por %p143, %p144
      %s147 = sadd.s32 %s146, 1
      %p150 = scmp.eq.s32.totalorder %s37, 3
      %p151 = scmp.ne.s32.totalorder %s146, %s148
      %p152 = scmp.eq.s32.totalorder %s37, 0
      %p153 = por %p151, %p152
      %p154 = scmp.ne.s32.totalorder %s146, %s148
      %p155 = scmp.eq.s32.totalorder %s42, 3
      %p156 = por %p154, %p155
      %p157 = scmp.ne.s32.totalorder %s148, %s149
      %p158 = scmp.eq.s32.totalorder %s42, 0
      %p159 = por %p157, %p158
      %p160 = scmp.ne.s32.totalorder %s148, %s149
      %p161 = scmp.eq.s32.totalorder %s43, 3
      %p162 = por %p160, %p161
      %p164 = scmp.ne.s32.totalorder %s149, %s163
      %p165 = scmp.eq.s32.totalorder %s43, 0
      %p166 = por %p164, %p165
      %s168 = sadd.s32 %s167, 1
      %p171 = scmp.eq.s32.totalorder %s37, 3
      %p172 = scmp.ne.s32.totalorder %s167, %s169
      %p173 = scmp.eq.s32.totalorder %s37, 0
      %p174 = por %p172, %p173
      %p175 = scmp.ne.s32.totalorder %s167, %s169
      %p176 = scmp.eq.s32.totalorder %s42, 3
      %p177 = por %p175, %p176
      %p178 = scmp.ne.s32.totalorder %s169, %s170
      %p179 = scmp.eq.s32.totalorder %s42, 0
      %p180 = por %p178, %p179
      %p181 = scmp.ne.s32.totalorder %s169, %s170
      %p182 = scmp.eq.s32.totalorder %s43, 3
      %p183 = por %p181, %p182
      %p185 = scmp.ne.s32.totalorder %s170, %s184
      %p186 = scmp.eq.s32.totalorder %s43, 0
      %p187 = por %p185, %p186
      %s189 = sadd.s32 %s188, 1
      %p192 = scmp.eq.s32.totalorder %s37, 3
      %p193 = scmp.ne.s32.totalorder %s188, %s190
      %p194 = scmp.eq.s32.totalorder %s37, 0
      %p195 = por %p193, %p194
      %p196 = scmp.ne.s32.totalorder %s188, %s190
      %p197 = scmp.eq.s32.totalorder %s42, 3
      %p198 = por %p196, %p197
      %p199 = scmp.ne.s32.totalorder %s190, %s191
      %p200 = scmp.eq.s32.totalorder %s42, 0
      %p201 = por %p199, %p200
      %p202 = scmp.ne.s32.totalorder %s190, %s191
      %p203 = scmp.eq.s32.totalorder %s43, 3
      %p204 = por %p202, %p203
      %p206 = scmp.ne.s32.totalorder %s191, %s205
      %p207 = scmp.eq.s32.totalorder %s43, 0
      %p208 = por %p206, %p207
      %s210 = sadd.s32 %s209, 1
      %p213 = scmp.eq.s32.totalorder %s37, 3
      %p214 = scmp.ne.s32.totalorder %s209, %s211
      %p215 = scmp.eq.s32.totalorder %s37, 0
      %p216 = por %p214, %p215
      %p217 = scmp.ne.s32.totalorder %s209, %s211
      %p218 = scmp.eq.s32.totalorder %s42, 3
      %p219 = por %p217, %p218
      %p220 = scmp.ne.s32.totalorder %s211, %s212
      %p221 = scmp.eq.s32.totalorder %s42, 0
      %p222 = por %p220, %p221
      %p223 = scmp.ne.s32.totalorder %s211, %s212
      %p224 = scmp.eq.s32.totalorder %s43, 3
      %p225 = por %p223, %p224
      %p227 = scmp.ne.s32.totalorder %s212, %s226
      %p228 = scmp.eq.s32.totalorder %s43, 0
      %p229 = por %p227, %p228
      %s231 = sadd.s32 %s230, 1
      %p234 = scmp.eq.s32.totalorder %s37, 3
      %p235 = scmp.ne.s32.totalorder %s230, %s232
      %p236 = scmp.eq.s32.totalorder %s37, 0
      %p237 = por %p235, %p236
      %p238 = scmp.ne.s32.totalorder %s230, %s232
      %p239 = scmp.eq.s32.totalorder %s42, 3
      %p240 = por %p238, %p239
      %p241 = scmp.ne.s32.totalorder %s232, %s233
      %p242 = scmp.eq.s32.totalorder %s42, 0
      %p243 = por %p241, %p242
      %p244 = scmp.ne.s32.totalorder %s232, %s233
      %p245 = scmp.eq.s32.totalorder %s43, 3
      %p246 = por %p244, %p245
      %p248 = scmp.ne.s32.totalorder %s233, %s247
      %p249 = scmp.eq.s32.totalorder %s43, 0
      %p250 = por %p248, %p249
      %s252 = sadd.s32 %s251, 1
      %p255 = scmp.eq.s32.totalorder %s37, 3
      %p256 = scmp.ne.s32.totalorder %s251, %s253
      %p257 = scmp.eq.s32.totalorder %s37, 0
      %p258 = por %p256, %p257
      %p259 = scmp.ne.s32.totalorder %s251, %s253
      %p260 = scmp.eq.s32.totalorder %s42, 3
      %p261 = por %p259, %p260
      %p262 = scmp.ne.s32.totalorder %s253, %s254
      %p263 = scmp.eq.s32.totalorder %s42, 0
      %p264 = por %p262, %p263
      %p265 = scmp.ne.s32.totalorder %s253, %s254
      %p266 = scmp.eq.s32.totalorder %s43, 3
      %p267 = por %p265, %p266
      %p269 = scmp.ne.s32.totalorder %s254, %s268
      %p270 = scmp.eq.s32.totalorder %s43, 0
      %p271 = por %p269, %p270
      %s273 = sadd.s32 %s272, 1
      %p276 = scmp.eq.s32.totalorder %s37, 3
      %p277 = scmp.ne.s32.totalorder %s272, %s274
      %p278 = scmp.eq.s32.totalorder %s37, 0
      %p279 = por %p277, %p278
      %p280 = scmp.ne.s32.totalorder %s272, %s274
      %p281 = scmp.eq.s32.totalorder %s42, 3
      %p282 = por %p280, %p281
      %p283 = scmp.ne.s32.totalorder %s274, %s275
      %p284 = scmp.eq.s32.totalorder %s42, 0
      %p285 = por %p283, %p284
      %p286 = scmp.ne.s32.totalorder %s274, %s275
      %p287 = scmp.eq.s32.totalorder %s43, 3
      %p288 = por %p286, %p287
      %p290 = scmp.ne.s32.totalorder %s275, %s289
      %p291 = scmp.eq.s32.totalorder %s43, 0
      %p292 = por %p290, %p291
      %s294 = sadd.s32 %s293, 1
      %p297 = scmp.eq.s32.totalorder %s37, 3
      %p298 = scmp.ne.s32.totalorder %s293, %s295
      %p299 = scmp.eq.s32.totalorder %s37, 0
      %p300 = por %p298, %p299
      %p301 = scmp.ne.s32.totalorder %s293, %s295
      %p302 = scmp.eq.s32.totalorder %s42, 3
      %p303 = por %p301, %p302
      %p304 = scmp.ne.s32.totalorder %s295, %s296
      %p305 = scmp.eq.s32.totalorder %s42, 0
      %p306 = por %p304, %p305
      %p307 = scmp.ne.s32.totalorder %s295, %s296
      %p308 = scmp.eq.s32.totalorder %s43, 3
      %p309 = por %p307, %p308
      %p311 = scmp.ne.s32.totalorder %s296, %s310
      %p312 = scmp.eq.s32.totalorder %s43, 0
      %p313 = por %p311, %p312
      %s315 = sadd.s32 %s314, 1
      %p318 = scmp.eq.s32.totalorder %s37, 3
      %p319 = scmp.ne.s32.totalorder %s314, %s316
      %p320 = scmp.eq.s32.totalorder %s37, 0
      %p321 = por %p319, %p320
      %p322 = scmp.ne.s32.totalorder %s314, %s316
      %p323 = scmp.eq.s32.totalorder %s42, 3
      %p324 = por %p322, %p323
      %p325 = scmp.ne.s32.totalorder %s316, %s317
      %p326 = scmp.eq.s32.totalorder %s42, 0
      %p327 = por %p325, %p326
      %p328 = scmp.ne.s32.totalorder %s316, %s317
      %p329 = scmp.eq.s32.totalorder %s43, 3
      %p330 = por %p328, %p329
      %p332 = scmp.ne.s32.totalorder %s317, %s331
      %p333 = scmp.eq.s32.totalorder %s43, 0
      %p334 = por %p332, %p333
      %s336 = sadd.s32 %s335, 1
      %p339 = scmp.eq.s32.totalorder %s37, 3
      %p340 = scmp.ne.s32.totalorder %s335, %s337
      %p341 = scmp.eq.s32.totalorder %s37, 0
      %p342 = por %p340, %p341
      %p343 = scmp.ne.s32.totalorder %s335, %s337
      %p344 = scmp.eq.s32.totalorder %s42, 3
      %p345 = por %p343, %p344
      %p346 = scmp.ne.s32.totalorder %s337, %s338
      %p347 = scmp.eq.s32.totalorder %s42, 0
      %p348 = por %p346, %p347
      %p349 = scmp.ne.s32.totalorder %s337, %s338
      %p350 = scmp.eq.s32.totalorder %s43, 3
      %p351 = por %p349, %p350
      %p353 = scmp.ne.s32.totalorder %s338, %s352
      %p354 = scmp.eq.s32.totalorder %s43, 0
      %p355 = por %p353, %p354
      %p356 = scmp.le.s32.totalorder 1, %s37
      %p357 = scmp.lt.s32.totalorder %s37, 5
      %p358 = pnand %p356, %p357
      %p359 = pneg %p358
      // Predicated region
      $region9: #{tpu_custom_call.1} parent=5 // pred_check
        _
      $region10: #{tpu_custom_call.1} parent=5 // pred_check_branch
        %361 = sbr.rel (%p358) target = $region12
      $region11: #{tpu_custom_call.1} parent=5 // pred_region
        %s362 = ssub.s32 %s37, 1
        // Predicated region
        $region13: #{tpu_custom_call.1} parent=11 // pred_check
          %p363 = pneg %p138
        $region14: #{tpu_custom_call.1} parent=11 // pred_check_branch
          %365 = sbr.rel (%p363) target = $region16
        $region15: #{tpu_custom_call.1} parent=11 // pred_region
          %367 = vsyncadd [#allocation12], 0
          %s368 = sshll.u32 %s4, 4
          %s369 = int_to_ptr.hbm [resolvable:$true] %s368
          %s370 = sshll.u32 [#allocation11], 4
          %s371 = int_to_ptr.vmem [resolvable:$true] %s370
          %376 = dma.hbm_to_vmem [thread:$0]  %s369, 1024, %s371, [#allocation12], 64, 64, 4
        $region16: #{tpu_custom_call.1} parent=11 // pred_fallthru
          _
        // Predicated region
        $region17: #{tpu_custom_call.1} parent=11 // pred_check
          %p377 = pneg %p159
        $region18: #{tpu_custom_call.1} parent=11 // pred_check_branch
          %379 = sbr.rel (%p377) target = $region20
        $region19: #{tpu_custom_call.1} parent=11 // pred_region
          _
        $region20: #{tpu_custom_call.1} parent=11 // pred_fallthru
          _
        // Predicated region
        $region21: #{tpu_custom_call.1} parent=11 // pred_check
          %p380 = pneg %p180
        $region22: #{tpu_custom_call.1} parent=11 // pred_check_branch
          %382 = sbr.rel (%p380) target = $region24
        $region23: #{tpu_custom_call.1} parent=11 // pred_region
          _
        $region24: #{tpu_custom_call.1} parent=11 // pred_fallthru
          _
        // Predicated region
        $region25: #{tpu_custom_call.1} parent=11 // pred_check
          %p383 = pneg %p201
        $region26: #{tpu_custom_call.1} parent=11 // pred_check_branch
          %385 = sbr.rel (%p383) target = $region28
        $region27: #{tpu_custom_call.1} parent=11 // pred_region
          _
        $region28: #{tpu_custom_call.1} parent=11 // pred_fallthru
          _
        // Predicated region
        $region29: #{tpu_custom_call.1} parent=11 // pred_check
          %p386 = pneg %p222
        $region30: #{tpu_custom_call.1} parent=11 // pred_check_branch
          %388 = sbr.rel (%p386) target = $region32
        $region31: #{tpu_custom_call.1} parent=11 // pred_region
          %390 = vsyncadd [#allocation12], 0
          %s391 = sshll.u32 %s8, 4
          %s392 = int_to_ptr.hbm [resolvable:$true] %s391
          %s393 = sshll.u32 [#allocation13], 4
          %s394 = int_to_ptr.vmem [resolvable:$true] %s393
          %399 = dma.hbm_to_vmem [thread:$0]  %s392, 1024, %s394, [#allocation12], 64, 64, 4
        $region32: #{tpu_custom_call.1} parent=11 // pred_fallthru
          _
        // Predicated region
        $region33: #{tpu_custom_call.1} parent=11 // pred_check
          %p400 = pneg %p243
        $region34: #{tpu_custom_call.1} parent=11 // pred_check_branch
          %402 = sbr.rel (%p400) target = $region36
        $region35: #{tpu_custom_call.1} parent=11 // pred_region
          _
        $region36: #{tpu_custom_call.1} parent=11 // pred_fallthru
          _
        // Predicated region
        $region37: #{tpu_custom_call.1} parent=11 // pred_check
          %p403 = pneg %p264
        $region38: #{tpu_custom_call.1} parent=11 // pred_check_branch
          %405 = sbr.rel (%p403) target = $region40
        $region39: #{tpu_custom_call.1} parent=11 // pred_region
          _
        $region40: #{tpu_custom_call.1} parent=11 // pred_fallthru
          _
        // Predicated region
        $region41: #{tpu_custom_call.1} parent=11 // pred_check
          %p406 = pneg %p285
        $region42: #{tpu_custom_call.1} parent=11 // pred_check_branch
          %408 = sbr.rel (%p406) target = $region44
        $region43: #{tpu_custom_call.1} parent=11 // pred_region
          _
        $region44: #{tpu_custom_call.1} parent=11 // pred_fallthru
          _
        // Predicated region
        $region45: #{tpu_custom_call.1} parent=11 // pred_check
          %p409 = pneg %p306
        $region46: #{tpu_custom_call.1} parent=11 // pred_check_branch
          %411 = sbr.rel (%p409) target = $region48
        $region47: #{tpu_custom_call.1} parent=11 // pred_region
          %413 = vsyncadd [#allocation15], 0
          %s414 = sshll.u32 %s12, 4
          %s415 = int_to_ptr.hbm [resolvable:$true] %s414
          %s416 = sshll.u32 [#allocation14], 4
          %s417 = int_to_ptr.vmem [resolvable:$true] %s416
          %422 = dma.hbm_to_vmem [thread:$0]  %s415, 1024, %s417, [#allocation15], 64, 64, 4
        $region48: #{tpu_custom_call.1} parent=11 // pred_fallthru
          _
        // Predicated region
        $region49: #{tpu_custom_call.1} parent=11 // pred_check
          %p423 = pneg %p327
        $region50: #{tpu_custom_call.1} parent=11 // pred_check_branch
          %425 = sbr.rel (%p423) target = $region52
        $region51: #{tpu_custom_call.1} parent=11 // pred_region
          _
        $region52: #{tpu_custom_call.1} parent=11 // pred_fallthru
          _
      $region12: #{tpu_custom_call.1} parent=5 // pred_fallthru
        _
      %p426 = scmp.lt.s32.totalorder %s37, 4
      // Predicated region
      $region53: #{tpu_custom_call.1} parent=5 // pred_check
        %p427 = pneg %p426
      $region54: #{tpu_custom_call.1} parent=5 // pred_check_branch
        %429 = sbr.rel (%p427) target = $region56
      $region55: #{tpu_custom_call.1} parent=5 // pred_region
        // Predicated region
        $region57: #{tpu_custom_call.1} parent=55 // pred_check
          %p430 = pneg %p57
        $region58: #{tpu_custom_call.1} parent=55 // pred_check_branch
          %432 = sbr.rel (%p430) target = $region60
        $region59: #{tpu_custom_call.1} parent=55 // pred_region
          %s433 = sand.u32 %s47, 1
          %s434 = scalar_lea.sflag [#allocation6], %s433
          %s435 = sand.u32 %s47, 1
          %s436 = smul.addr %s435, 128
          %s437 = scalar_lea.vmem [#allocation5], %s436
          %s438 = smul.u32 32, %s37
          %440 = vsyncadd %s434, 0
          %s441 = smul.addr %s438, 4
          %s442 = scalar_lea.hbm %s1, %s441
          %s443 = sshll.u32 %s442, 4
          %s444 = int_to_ptr.hbm [resolvable:$true] %s443
          %s445 = sshll.u32 %s437, 4
          %s446 = int_to_ptr.vmem [resolvable:$true] %s445
          %451 = dma.hbm_to_vmem [thread:$0]  %s444, 2048, %s446, %s434, 64, 64, 4
        $region60: #{tpu_custom_call.1} parent=55 // pred_fallthru
          _
        // Predicated region
        $region61: #{tpu_custom_call.1} parent=55 // pred_check
          %p452 = pneg %p83
        $region62: #{tpu_custom_call.1} parent=55 // pred_check_branch
          %454 = sbr.rel (%p452) target = $region64
        $region63: #{tpu_custom_call.1} parent=55 // pred_region
          %s455 = sand.u32 %s37, 1
          %s456 = scalar_lea.sflag [#allocation9], %s455
          %s457 = sand.u32 %s73, 1
          %s458 = smul.addr %s457, 16
          %s459 = scalar_lea.vmem [#allocation8], %s458
          %s460 = smul.u32 2, %s37
          %462 = vsyncadd %s456, 0
          %s463 = smul.addr %s460, 4
          %s464 = scalar_lea.hbm %s2, %s463
          %s465 = sshll.u32 %s464, 4
          %s466 = int_to_ptr.hbm [resolvable:$true] %s465
          %s467 = sshll.u32 %s459, 4
          %s468 = int_to_ptr.vmem [resolvable:$true] %s467
          %473 = dma.hbm_to_vmem [thread:$0]  %s466, 256, %s468, %s456, 512, 128, 8
        $region64: #{tpu_custom_call.1} parent=55 // pred_fallthru
          _
        // Predicated region
        $region65: #{tpu_custom_call.1} parent=55 // pred_check
          %p474 = pneg %p111
        $region66: #{tpu_custom_call.1} parent=55 // pred_check_branch
          %476 = sbr.rel (%p474) target = $region68
        $region67: #{tpu_custom_call.1} parent=55 // pred_region
          %s477 = sand.u32 %s37, 1
          %s478 = scalar_lea.sflag [#allocation9], %s477
          %s479 = sand.u32 %s101, 1
          %s480 = smul.addr %s479, 64
          %s481 = scalar_lea.vmem [#allocation10], %s480
          %s482 = sld [smem:[#allocation4 + %s37]]
          %484 = vsyncadd %s478, 0
          %s485 = smul.addr %s482, 16
          %s486 = smul.addr %s485, 4
          %s487 = scalar_lea.hbm %s3, %s486
          %s488 = sshll.u32 %s487, 4
          %s489 = int_to_ptr.hbm [resolvable:$true] %s488
          %s490 = sshll.u32 %s481, 4
          %s491 = int_to_ptr.vmem [resolvable:$true] %s490
          %496 = dma.hbm_to_vmem [thread:$0]  %s489, 1024, %s491, %s478, 64, 64, 4
        $region68: #{tpu_custom_call.1} parent=55 // pred_fallthru
          _
      $region56: #{tpu_custom_call.1} parent=5 // pred_fallthru
        _
      %p497 = scmp.le.s32.totalorder 1, %s37
      %p498 = scmp.lt.s32.totalorder %s37, 5
      %p499 = pnand %p497, %p498
      %p500 = pneg %p499
      // Predicated region
      $region69: #{tpu_custom_call.1} parent=5 // pred_check
        _
      $region70: #{tpu_custom_call.1} parent=5 // pred_check_branch
        %502 = sbr.rel (%p499) target = $region72
      $region71: #{tpu_custom_call.1} parent=5 // pred_region
        %s503 = ssub.s32 %s37, 1
        %s504 = sand.u32 %s50, 1
        %s505 = scalar_lea.sflag [#allocation6], %s504
        %s506 = sand.u32 %s50, 1
        %s507 = smul.addr %s506, 128
        %s508 = scalar_lea.vmem [#allocation5], %s507
        // Predicated region
        $region73: #{tpu_custom_call.1} parent=71 // pred_check
          %p509 = pneg %p63
        $region74: #{tpu_custom_call.1} parent=71 // pred_check_branch
          %511 = sbr.rel (%p509) target = $region76
        $region75: #{tpu_custom_call.1} parent=71 // pred_region
          %513 = dma.done %s505, 2048
        $region76: #{tpu_custom_call.1} parent=71 // pred_fallthru
          _
        %s514 = sand.u32 %s42, 1
        %s515 = scalar_lea.sflag [#allocation9], %s514
        %s516 = sand.u32 %s76, 1
        %s517 = smul.addr %s516, 16
        %s518 = scalar_lea.vmem [#allocation8], %s517
        // Predicated region
        $region77: #{tpu_custom_call.1} parent=71 // pred_check
          %p519 = pneg %p89
        $region78: #{tpu_custom_call.1} parent=71 // pred_check_branch
          %521 = sbr.rel (%p519) target = $region80
        $region79: #{tpu_custom_call.1} parent=71 // pred_region
          %523 = dma.done %s515, 256
        $region80: #{tpu_custom_call.1} parent=71 // pred_fallthru
          _
        %s524 = sand.u32 %s42, 1
        %s525 = scalar_lea.sflag [#allocation9], %s524
        %s526 = sand.u32 %s104, 1
        %s527 = smul.addr %s526, 64
        %s528 = scalar_lea.vmem [#allocation10], %s527
        // Predicated region
        $region81: #{tpu_custom_call.1} parent=71 // pred_check
          %p529 = pneg %p117
        $region82: #{tpu_custom_call.1} parent=71 // pred_check_branch
          %531 = sbr.rel (%p529) target = $region84
        $region83: #{tpu_custom_call.1} parent=71 // pred_region
          %533 = dma.done %s525, 1024
        $region84: #{tpu_custom_call.1} parent=71 // pred_fallthru
          _
        // Predicated region
        $region85: #{tpu_custom_call.1} parent=71 // pred_check
          %p534 = pneg %p138
        $region86: #{tpu_custom_call.1} parent=71 // pred_check_branch
          %536 = sbr.rel (%p534) target = $region88
        $region87: #{tpu_custom_call.1} parent=71 // pred_region
          %538 = dma.done [#allocation12], 1024
        $region88: #{tpu_custom_call.1} parent=71 // pred_fallthru
          _
        // Predicated region
        $region89: #{tpu_custom_call.1} parent=71 // pred_check
          %p539 = pneg %p222
        $region90: #{tpu_custom_call.1} parent=71 // pred_check_branch
          %541 = sbr.rel (%p539) target = $region92
        $region91: #{tpu_custom_call.1} parent=71 // pred_region
          %543 = dma.done [#allocation12], 1024
        $region92: #{tpu_custom_call.1} parent=71 // pred_fallthru
          _
        // Predicated region
        $region93: #{tpu_custom_call.1} parent=71 // pred_check
          %p544 = pneg %p306
        $region94: #{tpu_custom_call.1} parent=71 // pred_check_branch
          %546 = sbr.rel (%p544) target = $region96
        $region95: #{tpu_custom_call.1} parent=71 // pred_region
          %548 = dma.done [#allocation15], 1024
        $region96: #{tpu_custom_call.1} parent=71 // pred_fallthru
          _
        %s549 = sand.u32 %s50, 1
        %s550 = scalar_lea.sflag [#allocation6], %s549
        %s551 = sand.u32 %s50, 1
        %s552 = smul.addr %s551, 128
        %s553 = scalar_lea.vmem [#allocation5], %s552
        %p554 = pneg %p63
        %p555 = pneg %p60
        %s556 = sand.u32 %s42, 1
        %s557 = scalar_lea.sflag [#allocation9], %s556
        %s558 = sand.u32 %s76, 1
        %s559 = smul.addr %s558, 16
        %s560 = scalar_lea.vmem [#allocation8], %s559
        %p561 = pneg %p89
        %p562 = pneg %p86
        %s563 = sand.u32 %s42, 1
        %s564 = scalar_lea.sflag [#allocation9], %s563
        %s565 = sand.u32 %s104, 1
        %s566 = smul.addr %s565, 64
        %s567 = scalar_lea.vmem [#allocation10], %s566
        %p568 = pneg %p117
        %p569 = pneg %p114
        %p570 = pneg %p138
        %p571 = pneg %p135
        %p572 = pneg %p159
        %p573 = pneg %p156
        %p574 = pneg %p180
        %p575 = pneg %p177
        %p576 = pneg %p201
        %p577 = pneg %p198
        %p578 = pneg %p222
        %p579 = pneg %p219
        %p580 = pneg %p243
        %p581 = pneg %p240
        %p582 = pneg %p264
        %p583 = pneg %p261
        %p584 = pneg %p285
        %p585 = pneg %p282
        %p586 = pneg %p306
        %p587 = pneg %p303
        %p588 = pneg %p327
        %p589 = pneg %p324
        %p590 = pneg %p348
        %p591 = pneg %p345
        %s592 = smul.u32 32, %s42
        %s593 = smul.u32 2, %s42
        %s594 = sld [smem:[#allocation4 + %s42]]
        %p595 = scmp.eq.s32.totalorder %s42, 0
        // Predicated region
        $region97: #{tpu_custom_call.1} parent=71 // pred_check
          %p596 = pneg %p595
        $region98: #{tpu_custom_call.1} parent=71 // pred_check_branch
          %598 = sbr.rel (%p596) target = $region100
        $region99: #{tpu_custom_call.1} parent=71 // pred_region
          %599 = vst [vmem:[#allocation2] sm:$0xff] 0.0
          %600 = vst [vmem:[#allocation2 + $0x8] sm:$0xff] 0.0
        $region100: #{tpu_custom_call.1} parent=71 // pred_fallthru
          _
        %v601 = vld [vmem:[%s508] sm:$0xf]
        %v602 = vld [vmem:[%s508 + $0x4] sm:$0xf]
        %v603 = vld [vmem:[%s508 + $0x8] sm:$0xf]
        %v604 = vld [vmem:[%s508 + $0xc] sm:$0xf]
        %v605 = vld [vmem:[%s508 + $0x10] sm:$0xf]
        %v606 = vld [vmem:[%s508 + $0x14] sm:$0xf]
        %v607 = vld [vmem:[%s508 + $0x18] sm:$0xf]
        %v608 = vld [vmem:[%s508 + $0x1c] sm:$0xf]
        %v609 = vld [vmem:[%s508 + $0x20] sm:$0xf]
        %v610 = vld [vmem:[%s508 + $0x24] sm:$0xf]
        %v611 = vld [vmem:[%s508 + $0x28] sm:$0xf]
        %v612 = vld [vmem:[%s508 + $0x2c] sm:$0xf]
        %v613 = vld [vmem:[%s508 + $0x30] sm:$0xf]
        %v614 = vld [vmem:[%s508 + $0x34] sm:$0xf]
        %v615 = vld [vmem:[%s508 + $0x38] sm:$0xf]
        %v616 = vld [vmem:[%s508 + $0x3c] sm:$0xf]
        %v617 = vld [vmem:[%s508 + $0x40] sm:$0xf]
        %v618 = vld [vmem:[%s508 + $0x44] sm:$0xf]
        %v619 = vld [vmem:[%s508 + $0x48] sm:$0xf]
        %v620 = vld [vmem:[%s508 + $0x4c] sm:$0xf]
        %v621 = vld [vmem:[%s508 + $0x50] sm:$0xf]
        %v622 = vld [vmem:[%s508 + $0x54] sm:$0xf]
        %v623 = vld [vmem:[%s508 + $0x58] sm:$0xf]
        %v624 = vld [vmem:[%s508 + $0x5c] sm:$0xf]
        %v625 = vld [vmem:[%s508 + $0x60] sm:$0xf]
        %v626 = vld [vmem:[%s508 + $0x64] sm:$0xf]
        %v627 = vld [vmem:[%s508 + $0x68] sm:$0xf]
        %v628 = vld [vmem:[%s508 + $0x6c] sm:$0xf]
        %v629 = vld [vmem:[%s508 + $0x70] sm:$0xf]
        %v630 = vld [vmem:[%s508 + $0x74] sm:$0xf]
        %v631 = vld [vmem:[%s508 + $0x78] sm:$0xf]
        %v632 = vld [vmem:[%s508 + $0x7c] sm:$0xf]
        %v633 = vld [vmem:[%s528] sm:$0xf]
        %v634 = vld [vmem:[%s528 + $0x4] sm:$0xf]
        %v635 = vld [vmem:[%s528 + $0x8] sm:$0xf]
        %v636 = vld [vmem:[%s528 + $0xc] sm:$0xf]
        %v637 = vld [vmem:[%s528 + $0x10] sm:$0xf]
        %v638 = vld [vmem:[%s528 + $0x14] sm:$0xf]
        %v639 = vld [vmem:[%s528 + $0x18] sm:$0xf]
        %v640 = vld [vmem:[%s528 + $0x1c] sm:$0xf]
        %v641 = vld [vmem:[%s528 + $0x20] sm:$0xf]
        %v642 = vld [vmem:[%s528 + $0x24] sm:$0xf]
        %v643 = vld [vmem:[%s528 + $0x28] sm:$0xf]
        %v644 = vld [vmem:[%s528 + $0x2c] sm:$0xf]
        %v645 = vld [vmem:[%s528 + $0x30] sm:$0xf]
        %v646 = vld [vmem:[%s528 + $0x34] sm:$0xf]
        %v647 = vld [vmem:[%s528 + $0x38] sm:$0xf]
        %v648 = vld [vmem:[%s528 + $0x3c] sm:$0xf]
        %v681 = vunpack.c.l.b16 %v601
        %v682 = vunpack.c.l.b16 %v602
        %v683 = vunpack.c.l.b16 %v603
        %v684 = vunpack.c.l.b16 %v604
        %v685 = vunpack.c.l.b16 %v605
        %v686 = vunpack.c.l.b16 %v606
        %v687 = vunpack.c.l.b16 %v607
        %v688 = vunpack.c.l.b16 %v608
        %v689 = vunpack.c.l.b16 %v609
        %v690 = vunpack.c.l.b16 %v610
        %v691 = vunpack.c.l.b16 %v611
        %v692 = vunpack.c.l.b16 %v612
        %v693 = vunpack.c.l.b16 %v613
        %v694 = vunpack.c.l.b16 %v614
        %v695 = vunpack.c.l.b16 %v615
        %v696 = vunpack.c.l.b16 %v616
        %v697 = vunpack.c.l.b16 %v617
        %v698 = vunpack.c.l.b16 %v618
        %v699 = vunpack.c.l.b16 %v619
        %v700 = vunpack.c.l.b16 %v620
        %v701 = vunpack.c.l.b16 %v621
        %v702 = vunpack.c.l.b16 %v622
        %v703 = vunpack.c.l.b16 %v623
        %v704 = vunpack.c.l.b16 %v624
        %v705 = vunpack.c.l.b16 %v625
        %v706 = vunpack.c.l.b16 %v626
        %v707 = vunpack.c.l.b16 %v627
        %v708 = vunpack.c.l.b16 %v628
        %v709 = vunpack.c.l.b16 %v629
        %v710 = vunpack.c.l.b16 %v630
        %v711 = vunpack.c.l.b16 %v631
        %v712 = vunpack.c.l.b16 %v632
        %v713 = vpack.c.b16 %v682, %v681
        %v714 = vpack.c.b16 %v684, %v683
        %v715 = vpack.c.b16 %v686, %v685
        %v716 = vpack.c.b16 %v688, %v687
        %v717 = vpack.c.b16 %v690, %v689
        %v718 = vpack.c.b16 %v692, %v691
        %v719 = vpack.c.b16 %v694, %v693
        %v720 = vpack.c.b16 %v696, %v695
        %v721 = vpack.c.b16 %v698, %v697
        %v722 = vpack.c.b16 %v700, %v699
        %v723 = vpack.c.b16 %v702, %v701
        %v724 = vpack.c.b16 %v704, %v703
        %v725 = vpack.c.b16 %v706, %v705
        %v726 = vpack.c.b16 %v708, %v707
        %v727 = vpack.c.b16 %v710, %v709
        %v728 = vpack.c.b16 %v712, %v711
        %v761 = vunpack.c.l.b16 %v633
        %v762 = vunpack.c.l.b16 %v634
        %v763 = vunpack.c.l.b16 %v635
        %v764 = vunpack.c.l.b16 %v636
        %v765 = vunpack.c.l.b16 %v637
        %v766 = vunpack.c.l.b16 %v638
        %v767 = vunpack.c.l.b16 %v639
        %v768 = vunpack.c.l.b16 %v640
        %v769 = vunpack.c.l.b16 %v641
        %v770 = vunpack.c.l.b16 %v642
        %v771 = vunpack.c.l.b16 %v643
        %v772 = vunpack.c.l.b16 %v644
        %v773 = vunpack.c.l.b16 %v645
        %v774 = vunpack.c.l.b16 %v646
        %v775 = vunpack.c.l.b16 %v647
        %v776 = vunpack.c.l.b16 %v648
        %v777 = vpack.c.b16 %v762, %v761
        %v778 = vpack.c.b16 %v764, %v763
        %v779 = vpack.c.b16 %v766, %v765
        %v780 = vpack.c.b16 %v768, %v767
        %v781 = vpack.c.b16 %v770, %v769
        %v782 = vpack.c.b16 %v772, %v771
        %v783 = vpack.c.b16 %v774, %v773
        %v784 = vpack.c.b16 %v776, %v775
        %793 = vmatpush.bf16.msra.mxu0 %v784
        %794 = vmatpush.bf16.msra.mxu0 %v783
        %795 = vmatpush.bf16.msra.mxu0 %v782
        %796 = vmatpush.bf16.msra.mxu0 %v781
        %797 = vmatpush.bf16.msra.mxu0 %v780
        %798 = vmatpush.bf16.msra.mxu0 %v779
        %799 = vmatpush.bf16.msra.mxu0 %v778
        %800 = vmatpush.bf16.msra.mxu0 %v777
        %801 = vmatmul.bf16.gmra.mxu0 %v713
        %v802 = vpop.f32.mrf.mxu0
        %v803 = vadd.f32 0.0, %v802
        %v804 = vpop.f32.mrf.mxu0
        %v805 = vadd.f32 0.0, %v804
        %806 = vmatmul.bf16.gmra.mxu0 %v714
        %v807 = vpop.f32.mrf.mxu0
        %v808 = vadd.f32 0.0, %v807
        %v809 = vpop.f32.mrf.mxu0
        %v810 = vadd.f32 0.0, %v809
        %811 = vmatmul.bf16.gmra.mxu0 %v715
        %v812 = vpop.f32.mrf.mxu0
        %v813 = vadd.f32 0.0, %v812
        %v814 = vpop.f32.mrf.mxu0
        %v815 = vadd.f32 0.0, %v814
        %816 = vmatmul.bf16.gmra.mxu0 %v716
        %v817 = vpop.f32.mrf.mxu0
        %v818 = vadd.f32 0.0, %v817
        %v819 = vpop.f32.mrf.mxu0
        %v820 = vadd.f32 0.0, %v819
        %821 = vmatmul.bf16.gmra.mxu0 %v717
        %v822 = vpop.f32.mrf.mxu0
        %v823 = vadd.f32 0.0, %v822
        %v824 = vpop.f32.mrf.mxu0
        %v825 = vadd.f32 0.0, %v824
        %826 = vmatmul.bf16.gmra.mxu0 %v718
        %v827 = vpop.f32.mrf.mxu0
        %v828 = vadd.f32 0.0, %v827
        %v829 = vpop.f32.mrf.mxu0
        %v830 = vadd.f32 0.0, %v829
        %831 = vmatmul.bf16.gmra.mxu0 %v719
        %v832 = vpop.f32.mrf.mxu0
        %v833 = vadd.f32 0.0, %v832
        %v834 = vpop.f32.mrf.mxu0
        %v835 = vadd.f32 0.0, %v834
        %836 = vmatmul.bf16.gmra.mxu0 %v720
        %v837 = vpop.f32.mrf.mxu0
        %v838 = vadd.f32 0.0, %v837
        %v839 = vpop.f32.mrf.mxu0
        %v840 = vadd.f32 0.0, %v839
        %841 = vmatmul.bf16.gmra.mxu0 %v721
        %v842 = vpop.f32.mrf.mxu0
        %v843 = vadd.f32 0.0, %v842
        %v844 = vpop.f32.mrf.mxu0
        %v845 = vadd.f32 0.0, %v844
        %846 = vmatmul.bf16.gmra.mxu0 %v722
        %v847 = vpop.f32.mrf.mxu0
        %v848 = vadd.f32 0.0, %v847
        %v849 = vpop.f32.mrf.mxu0
        %v850 = vadd.f32 0.0, %v849
        %851 = vmatmul.bf16.gmra.mxu0 %v723
        %v852 = vpop.f32.mrf.mxu0
        %v853 = vadd.f32 0.0, %v852
        %v854 = vpop.f32.mrf.mxu0
        %v855 = vadd.f32 0.0, %v854
        %856 = vmatmul.bf16.gmra.mxu0 %v724
        %v857 = vpop.f32.mrf.mxu0
        %v858 = vadd.f32 0.0, %v857
        %v859 = vpop.f32.mrf.mxu0
        %v860 = vadd.f32 0.0, %v859
        %861 = vmatmul.bf16.gmra.mxu0 %v725
        %v862 = vpop.f32.mrf.mxu0
        %v863 = vadd.f32 0.0, %v862
        %v864 = vpop.f32.mrf.mxu0
        %v865 = vadd.f32 0.0, %v864
        %866 = vmatmul.bf16.gmra.mxu0 %v726
        %v867 = vpop.f32.mrf.mxu0
        %v868 = vadd.f32 0.0, %v867
        %v869 = vpop.f32.mrf.mxu0
        %v870 = vadd.f32 0.0, %v869
        %871 = vmatmul.bf16.gmra.mxu0 %v727
        %v872 = vpop.f32.mrf.mxu0
        %v873 = vadd.f32 0.0, %v872
        %v874 = vpop.f32.mrf.mxu0
        %v875 = vadd.f32 0.0, %v874
        %876 = vmatmul.bf16.gmra.mxu0 %v728
        %v877 = vpop.f32.mrf.mxu0
        %v878 = vadd.f32 0.0, %v877
        %v879 = vpop.f32.mrf.mxu0
        %v880 = vadd.f32 0.0, %v879
        %881 = vdwg.mxu0
        %v882 = vld [vmem:[#allocation2] sm:$0xff]
        %v883 = vld [vmem:[#allocation2 + $0x8] sm:$0xff]
        %v884 = vld [vmem:[%s518] sm:$0xff]
        %v885 = vld [vmem:[%s518 + $0x8] sm:$0xff]
        %v886 = vpack.c.bf16 %v805, %v803
        %v887 = vpack.c.bf16 %v810, %v808
        %v888 = vpack.c.bf16 %v815, %v813
        %v889 = vpack.c.bf16 %v820, %v818
        %v890 = vpack.c.bf16 %v825, %v823
        %v891 = vpack.c.bf16 %v830, %v828
        %v892 = vpack.c.bf16 %v835, %v833
        %v893 = vpack.c.bf16 %v840, %v838
        %v894 = vpack.c.bf16 %v845, %v843
        %v895 = vpack.c.bf16 %v850, %v848
        %v896 = vpack.c.bf16 %v855, %v853
        %v897 = vpack.c.bf16 %v860, %v858
        %v898 = vpack.c.bf16 %v865, %v863
        %v899 = vpack.c.bf16 %v870, %v868
        %v900 = vpack.c.bf16 %v875, %v873
        %v901 = vpack.c.bf16 %v880, %v878
        %v904 = vunpack.c.l.b16 %v884
        %v905 = vunpack.c.h.b16 %v884
        %v906 = vunpack.c.l.b16 %v885
        %v907 = vunpack.c.h.b16 %v885
        %v908 = vpack.c.b16 %v906, %v904
        %v909 = vpack.c.b16 %v907, %v905
        %912 = vmatpush.bf16.msra.mxu0 %v893
        %913 = vmatpush.bf16.msra.mxu0 %v892
        %914 = vmatpush.bf16.msra.mxu0 %v891
        %915 = vmatpush.bf16.msra.mxu0 %v890
        %916 = vmatpush.bf16.msra.mxu0 %v889
        %917 = vmatpush.bf16.msra.mxu0 %v888
        %918 = vmatpush.bf16.msra.mxu0 %v887
        %919 = vmatpush.bf16.msra.mxu0 %v886
        %920 = vmatmul.bf16.gmra.mxu0 %v908
        %v921 = vpop.f32.mrf.mxu0
        %v922 = vadd.f32 0.0, %v921
        %v923 = vpop.f32.mrf.mxu0
        %v924 = vadd.f32 0.0, %v923
        %925 = vdwg.mxu0
        %926 = vmatpush.bf16.msra.mxu0 %v901
        %927 = vmatpush.bf16.msra.mxu0 %v900
        %928 = vmatpush.bf16.msra.mxu0 %v899
        %929 = vmatpush.bf16.msra.mxu0 %v898
        %930 = vmatpush.bf16.msra.mxu0 %v897
        %931 = vmatpush.bf16.msra.mxu0 %v896
        %932 = vmatpush.bf16.msra.mxu0 %v895
        %933 = vmatpush.bf16.msra.mxu0 %v894
        %934 = vmatmul.bf16.gmra.mxu0 %v909
        %v935 = vpop.f32.mrf.mxu0
        %v936 = vadd.f32 %v922, %v935
        %v937 = vpop.f32.mrf.mxu0
        %v938 = vadd.f32 %v924, %v937
        %939 = vdwg.mxu0
        %v940 = vadd.f32 %v882, %v936
        %v941 = vadd.f32 %v883, %v938
        %942 = vst [vmem:[#allocation2] sm:$0xff] %v940
        %943 = vst [vmem:[#allocation2 + $0x8] sm:$0xff] %v941
        %p944 = scmp.eq.s32.totalorder %s42, 3
        // Predicated region
        $region101: #{tpu_custom_call.1} parent=71 // pred_check
          %p945 = pneg %p944
        $region102: #{tpu_custom_call.1} parent=71 // pred_check_branch
          %947 = sbr.rel (%p945) target = $region104
        $region103: #{tpu_custom_call.1} parent=71 // pred_region
          %v948 = vld [vmem:[#allocation2] sm:$0xff]
          %v949 = vld [vmem:[#allocation2 + $0x8] sm:$0xff]
          %v950 = vpack.c.bf16 %v949, %v948
          %v951 = vld [vmem:[#allocation11] sm:$0xf]
          %v952 = vld [vmem:[#allocation11 + $0x4] sm:$0xf]
          %v953 = vld [vmem:[#allocation11 + $0x8] sm:$0xf]
          %v954 = vld [vmem:[#allocation11 + $0xc] sm:$0xf]
          %v955 = vld [vmem:[#allocation11 + $0x10] sm:$0xf]
          %v956 = vld [vmem:[#allocation11 + $0x14] sm:$0xf]
          %v957 = vld [vmem:[#allocation11 + $0x18] sm:$0xf]
          %v958 = vld [vmem:[#allocation11 + $0x1c] sm:$0xf]
          %v959 = vld [vmem:[#allocation11 + $0x20] sm:$0xf]
          %v960 = vld [vmem:[#allocation11 + $0x24] sm:$0xf]
          %v961 = vld [vmem:[#allocation11 + $0x28] sm:$0xf]
          %v962 = vld [vmem:[#allocation11 + $0x2c] sm:$0xf]
          %v963 = vld [vmem:[#allocation11 + $0x30] sm:$0xf]
          %v964 = vld [vmem:[#allocation11 + $0x34] sm:$0xf]
          %v965 = vld [vmem:[#allocation11 + $0x38] sm:$0xf]
          %v966 = vld [vmem:[#allocation11 + $0x3c] sm:$0xf]
          %v967 = vld [vmem:[%s5] sm:$0x1]
          %v969 = vperm.slane %v967, 0
          %v987 = vunpack.c.l.b16 %v951
          %v988 = vunpack.c.l.b16 %v952
          %v989 = vunpack.c.l.b16 %v953
          %v990 = vunpack.c.l.b16 %v954
          %v991 = vunpack.c.l.b16 %v955
          %v992 = vunpack.c.l.b16 %v956
          %v993 = vunpack.c.l.b16 %v957
          %v994 = vunpack.c.l.b16 %v958
          %v995 = vunpack.c.l.b16 %v959
          %v996 = vunpack.c.l.b16 %v960
          %v997 = vunpack.c.l.b16 %v961
          %v998 = vunpack.c.l.b16 %v962
          %v999 = vunpack.c.l.b16 %v963
          %v1000 = vunpack.c.l.b16 %v964
          %v1001 = vunpack.c.l.b16 %v965
          %v1002 = vunpack.c.l.b16 %v966
          %v1003 = vpack.c.b16 %v988, %v987
          %v1004 = vpack.c.b16 %v990, %v989
          %v1005 = vpack.c.b16 %v992, %v991
          %v1006 = vpack.c.b16 %v994, %v993
          %v1007 = vpack.c.b16 %v996, %v995
          %v1008 = vpack.c.b16 %v998, %v997
          %v1009 = vpack.c.b16 %v1000, %v999
          %v1010 = vpack.c.b16 %v1002, %v1001
          %1019 = vmatpush.bf16.msra.mxu0 %v1010
          %1020 = vmatpush.bf16.msra.mxu0 %v1009
          %1021 = vmatpush.bf16.msra.mxu0 %v1008
          %1022 = vmatpush.bf16.msra.mxu0 %v1007
          %1023 = vmatpush.bf16.msra.mxu0 %v1006
          %1024 = vmatpush.bf16.msra.mxu0 %v1005
          %1025 = vmatpush.bf16.msra.mxu0 %v1004
          %1026 = vmatpush.bf16.msra.mxu0 %v1003
          %1027 = vmatmul.bf16.gmra.mxu0 %v950
          %v1028 = vpop.f32.mrf.mxu0
          %v1029 = vadd.f32 %v969, %v1028
          %v1030 = vpop.f32.mrf.mxu0
          %v1031 = vadd.f32 %v969, %v1030
          %1032 = vdwg.mxu0
          %v1033 = vmax.f32 %v1029, 0.0
          %v1034 = vmax.f32 %v1031, 0.0
          %v1035 = vld [vmem:[%s6] sm:$0x1]
          %v1036 = vld [vmem:[%s7] sm:$0x1]
          %v1037 = vlaneseq
          %v1038 = vand.u32 %v1037, 127
          %vm1039 = vcmp.lt.s32.totalorder %v1038, 32
          %v1040 = vsel %vm1039, %v1033, 0.0
          %v1041 = vsel %vm1039, %v1034, 0.0
          %1042 = vadd.xlane.f32.xlu0 %v1040
          %v1043 = vpop.xlane.xlu0 %1042
          %1044 = vadd.xlane.f32.xlu0 %v1041
          %v1045 = vpop.xlane.xlu0 %1044
          %v1046 = vmul.f32 %v1043, 0.03125
          %v1047 = vmul.f32 %v1045, 0.03125
          %v1048 = vsub.f32 %v1033, %v1046
          %v1049 = vsub.f32 %v1034, %v1047
          %v1050 = vsel %vm1039, %v1048, 0.0
          %v1051 = vsel %vm1039, %v1049, 0.0
          %v1052 = vmul.f32 %v1050, %v1050
          %v1053 = vmul.f32 %v1051, %v1051
          %1054 = vadd.xlane.f32.xlu0 %v1052
          %v1055 = vpop.xlane.xlu0 %1054
          %1056 = vadd.xlane.f32.xlu0 %v1053
          %v1057 = vpop.xlane.xlu0 %1056
          %v1058 = vmul.f32 %v1055, 0.03125
          %v1059 = vmul.f32 %v1057, 0.03125
          %v1060 = vadd.f32 %v1058, 1e-05
          %v1061 = vadd.f32 %v1059, 1e-05
          %v1062 = vrsqrt.pop %v1060
          %v1063 = vmul.f32 %v1062, %v1060
          %v1064 = vmul.f32 %v1063, %v1062
          %v1065 = vmul.f32 0.5, %v1064
          %v1066 = vsub.f32 1.5, %v1065
          %v1067 = vmul.f32 %v1062, %v1066
          %vm1068 = vweird.f32 %v1060
          %vm1069 = vweird.f32 %v1062
          %vm1070 = vmor %vm1068, %vm1069
          %v1071 = vsel %vm1070, %v1062, %v1067
          %v1072 = vrsqrt.pop %v1061
          %v1073 = vmul.f32 %v1072, %v1061
          %v1074 = vmul.f32 %v1073, %v1072
          %v1075 = vmul.f32 0.5, %v1074
          %v1076 = vsub.f32 1.5, %v1075
          %v1077 = vmul.f32 %v1072, %v1076
          %vm1078 = vweird.f32 %v1061
          %vm1079 = vweird.f32 %v1072
          %vm1080 = vmor %vm1078, %vm1079
          %v1081 = vsel %vm1080, %v1072, %v1077
          %v1082 = vmul.f32 %v1048, %v1071
          %v1083 = vmul.f32 %v1049, %v1081
          %v1085 = vperm.slane %v1035, 0
          %v1087 = vmul.f32 %v1082, %v1085
          %v1088 = vmul.f32 %v1083, %v1085
          %v1090 = vperm.slane %v1036, 0
          %v1092 = vadd.f32 %v1087, %v1090
          %v1093 = vadd.f32 %v1088, %v1090
          %v1094 = vsel %vm1039, %v1092, 0.0
          %v1095 = vsel %vm1039, %v1093, 0.0
          %v1096 = vpack.c.bf16 %v1095, %v1094
          %v1097 = vld [vmem:[#allocation13] sm:$0xf]
          %v1098 = vld [vmem:[#allocation13 + $0x4] sm:$0xf]
          %v1099 = vld [vmem:[#allocation13 + $0x8] sm:$0xf]
          %v1100 = vld [vmem:[#allocation13 + $0xc] sm:$0xf]
          %v1101 = vld [vmem:[#allocation13 + $0x10] sm:$0xf]
          %v1102 = vld [vmem:[#allocation13 + $0x14] sm:$0xf]
          %v1103 = vld [vmem:[#allocation13 + $0x18] sm:$0xf]
          %v1104 = vld [vmem:[#allocation13 + $0x1c] sm:$0xf]
          %v1105 = vld [vmem:[#allocation13 + $0x20] sm:$0xf]
          %v1106 = vld [vmem:[#allocation13 + $0x24] sm:$0xf]
          %v1107 = vld [vmem:[#allocation13 + $0x28] sm:$0xf]
          %v1108 = vld [vmem:[#allocation13 + $0x2c] sm:$0xf]
          %v1109 = vld [vmem:[#allocation13 + $0x30] sm:$0xf]
          %v1110 = vld [vmem:[#allocation13 + $0x34] sm:$0xf]
          %v1111 = vld [vmem:[#allocation13 + $0x38] sm:$0xf]
          %v1112 = vld [vmem:[#allocation13 + $0x3c] sm:$0xf]
          %v1113 = vld [vmem:[%s9] sm:$0x1]
          %v1115 = vperm.slane %v1113, 0
          %v1133 = vunpack.c.l.b16 %v1097
          %v1134 = vunpack.c.l.b16 %v1098
          %v1135 = vunpack.c.l.b16 %v1099
          %v1136 = vunpack.c.l.b16 %v1100
          %v1137 = vunpack.c.l.b16 %v1101
          %v1138 = vunpack.c.l.b16 %v1102
          %v1139 = vunpack.c.l.b16 %v1103
          %v1140 = vunpack.c.l.b16 %v1104
          %v1141 = vunpack.c.l.b16 %v1105
          %v1142 = vunpack.c.l.b16 %v1106
          %v1143 = vunpack.c.l.b16 %v1107
          %v1144 = vunpack.c.l.b16 %v1108
          %v1145 = vunpack.c.l.b16 %v1109
          %v1146 = vunpack.c.l.b16 %v1110
          %v1147 = vunpack.c.l.b16 %v1111
          %v1148 = vunpack.c.l.b16 %v1112
          %v1149 = vpack.c.b16 %v1134, %v1133
          %v1150 = vpack.c.b16 %v1136, %v1135
          %v1151 = vpack.c.b16 %v1138, %v1137
          %v1152 = vpack.c.b16 %v1140, %v1139
          %v1153 = vpack.c.b16 %v1142, %v1141
          %v1154 = vpack.c.b16 %v1144, %v1143
          %v1155 = vpack.c.b16 %v1146, %v1145
          %v1156 = vpack.c.b16 %v1148, %v1147
          %1165 = vmatpush.bf16.msra.mxu0 %v1156
          %1166 = vmatpush.bf16.msra.mxu0 %v1155
          %1167 = vmatpush.bf16.msra.mxu0 %v1154
          %1168 = vmatpush.bf16.msra.mxu0 %v1153
          %1169 = vmatpush.bf16.msra.mxu0 %v1152
          %1170 = vmatpush.bf16.msra.mxu0 %v1151
          %1171 = vmatpush.bf16.msra.mxu0 %v1150
          %1172 = vmatpush.bf16.msra.mxu0 %v1149
          %1173 = vmatmul.bf16.gmra.mxu0 %v1096
          %v1174 = vpop.f32.mrf.mxu0
          %v1175 = vadd.f32 %v1115, %v1174
          %v1176 = vpop.f32.mrf.mxu0
          %v1177 = vadd.f32 %v1115, %v1176
          %1178 = vdwg.mxu0
          %v1179 = vmax.f32 %v1175, 0.0
          %v1180 = vmax.f32 %v1177, 0.0
          %v1181 = vld [vmem:[%s10] sm:$0x1]
          %v1182 = vld [vmem:[%s11] sm:$0x1]
          %vm1183 = vcmp.lt.s32.totalorder %v1038, 16
          %v1184 = vsel %vm1183, %v1179, 0.0
          %v1185 = vsel %vm1183, %v1180, 0.0
          %1186 = vadd.xlane.f32.xlu0 %v1184
          %v1187 = vpop.xlane.xlu0 %1186
          %1188 = vadd.xlane.f32.xlu0 %v1185
          %v1189 = vpop.xlane.xlu0 %1188
          %v1190 = vmul.f32 %v1187, 0.0625
          %v1191 = vmul.f32 %v1189, 0.0625
          %v1192 = vsub.f32 %v1179, %v1190
          %v1193 = vsub.f32 %v1180, %v1191
          %v1194 = vsel %vm1183, %v1192, 0.0
          %v1195 = vsel %vm1183, %v1193, 0.0
          %v1196 = vmul.f32 %v1194, %v1194
          %v1197 = vmul.f32 %v1195, %v1195
          %1198 = vadd.xlane.f32.xlu0 %v1196
          %v1199 = vpop.xlane.xlu0 %1198
          %1200 = vadd.xlane.f32.xlu0 %v1197
          %v1201 = vpop.xlane.xlu0 %1200
          %v1202 = vmul.f32 %v1199, 0.0625
          %v1203 = vmul.f32 %v1201, 0.0625
          %v1204 = vadd.f32 %v1202, 1e-05
          %v1205 = vadd.f32 %v1203, 1e-05
          %v1206 = vrsqrt.pop %v1204
          %v1207 = vmul.f32 %v1206, %v1204
          %v1208 = vmul.f32 %v1207, %v1206
          %v1209 = vmul.f32 0.5, %v1208
          %v1210 = vsub.f32 1.5, %v1209
          %v1211 = vmul.f32 %v1206, %v1210
          %vm1212 = vweird.f32 %v1204
          %vm1213 = vweird.f32 %v1206
          %vm1214 = vmor %vm1212, %vm1213
          %v1215 = vsel %vm1214, %v1206, %v1211
          %v1216 = vrsqrt.pop %v1205
          %v1217 = vmul.f32 %v1216, %v1205
          %v1218 = vmul.f32 %v1217, %v1216
          %v1219 = vmul.f32 0.5, %v1218
          %v1220 = vsub.f32 1.5, %v1219
          %v1221 = vmul.f32 %v1216, %v1220
          %vm1222 = vweird.f32 %v1205
          %vm1223 = vweird.f32 %v1216
          %vm1224 = vmor %vm1222, %vm1223
          %v1225 = vsel %vm1224, %v1216, %v1221
          %v1226 = vmul.f32 %v1192, %v1215
          %v1227 = vmul.f32 %v1193, %v1225
          %v1229 = vperm.slane %v1181, 0
          %v1231 = vmul.f32 %v1226, %v1229
          %v1232 = vmul.f32 %v1227, %v1229
          %v1234 = vperm.slane %v1182, 0
          %v1236 = vadd.f32 %v1231, %v1234
          %v1237 = vadd.f32 %v1232, %v1234
          %v1238 = vsel %vm1183, %v1236, 0.0
          %v1239 = vsel %vm1183, %v1237, 0.0
          %v1240 = vpack.c.bf16 %v1239, %v1238
          %v1241 = vld [vmem:[#allocation14] sm:$0xf]
          %v1242 = vld [vmem:[#allocation14 + $0x4] sm:$0xf]
          %v1243 = vld [vmem:[#allocation14 + $0x8] sm:$0xf]
          %v1244 = vld [vmem:[#allocation14 + $0xc] sm:$0xf]
          %v1245 = vld [vmem:[#allocation14 + $0x10] sm:$0xf]
          %v1246 = vld [vmem:[#allocation14 + $0x14] sm:$0xf]
          %v1247 = vld [vmem:[#allocation14 + $0x18] sm:$0xf]
          %v1248 = vld [vmem:[#allocation14 + $0x1c] sm:$0xf]
          %v1249 = vld [vmem:[#allocation14 + $0x20] sm:$0xf]
          %v1250 = vld [vmem:[#allocation14 + $0x24] sm:$0xf]
          %v1251 = vld [vmem:[#allocation14 + $0x28] sm:$0xf]
          %v1252 = vld [vmem:[#allocation14 + $0x2c] sm:$0xf]
          %v1253 = vld [vmem:[#allocation14 + $0x30] sm:$0xf]
          %v1254 = vld [vmem:[#allocation14 + $0x34] sm:$0xf]
          %v1255 = vld [vmem:[#allocation14 + $0x38] sm:$0xf]
          %v1256 = vld [vmem:[#allocation14 + $0x3c] sm:$0xf]
          %v1257 = vld [vmem:[%s13] sm:$0x1]
          %v1259 = vperm.slane %v1257, 0
          %v1277 = vunpack.c.l.b16 %v1241
          %v1278 = vunpack.c.l.b16 %v1242
          %v1279 = vunpack.c.l.b16 %v1243
          %v1280 = vunpack.c.l.b16 %v1244
          %v1281 = vunpack.c.l.b16 %v1245
          %v1282 = vunpack.c.l.b16 %v1246
          %v1283 = vunpack.c.l.b16 %v1247
          %v1284 = vunpack.c.l.b16 %v1248
          %v1285 = vunpack.c.l.b16 %v1249
          %v1286 = vunpack.c.l.b16 %v1250
          %v1287 = vunpack.c.l.b16 %v1251
          %v1288 = vunpack.c.l.b16 %v1252
          %v1289 = vunpack.c.l.b16 %v1253
          %v1290 = vunpack.c.l.b16 %v1254
          %v1291 = vunpack.c.l.b16 %v1255
          %v1292 = vunpack.c.l.b16 %v1256
          %v1293 = vpack.c.b16 %v1278, %v1277
          %v1294 = vpack.c.b16 %v1280, %v1279
          %v1295 = vpack.c.b16 %v1282, %v1281
          %v1296 = vpack.c.b16 %v1284, %v1283
          %v1297 = vpack.c.b16 %v1286, %v1285
          %v1298 = vpack.c.b16 %v1288, %v1287
          %v1299 = vpack.c.b16 %v1290, %v1289
          %v1300 = vpack.c.b16 %v1292, %v1291
          %1309 = vmatpush.bf16.msra.mxu0 %v1300
          %1310 = vmatpush.bf16.msra.mxu0 %v1299
          %1311 = vmatpush.bf16.msra.mxu0 %v1298
          %1312 = vmatpush.bf16.msra.mxu0 %v1297
          %1313 = vmatpush.bf16.msra.mxu0 %v1296
          %1314 = vmatpush.bf16.msra.mxu0 %v1295
          %1315 = vmatpush.bf16.msra.mxu0 %v1294
          %1316 = vmatpush.bf16.msra.mxu0 %v1293
          %1317 = vmatmul.bf16.gmra.mxu0 %v1240
          %v1318 = vpop.f32.mrf.mxu0
          %v1319 = vadd.f32 %v1259, %v1318
          %v1320 = vpop.f32.mrf.mxu0
          %v1321 = vadd.f32 %v1259, %v1320
          %1322 = vdwg.mxu0
          %1323 = vst [vmem:[#allocation16] sm:$0xff] %v1319
          %1324 = vst [vmem:[#allocation16 + $0x8] sm:$0xff] %v1321
        $region104: #{tpu_custom_call.1} parent=71 // pred_fallthru
          _
        // Predicated region
        $region105: #{tpu_custom_call.1} parent=71 // pred_check
          %p1325 = pneg %p345
        $region106: #{tpu_custom_call.1} parent=71 // pred_check_branch
          %1327 = sbr.rel (%p1325) target = $region108
        $region107: #{tpu_custom_call.1} parent=71 // pred_region
          %1329 = vsyncadd [#allocation7], 0
          %s1330 = sshll.u32 [#allocation16], 4
          %s1331 = int_to_ptr.vmem [resolvable:$true] %s1330
          %s1332 = sshll.u32 %s14, 4
          %s1333 = int_to_ptr.hbm [resolvable:$true] %s1332
          %1338 = dma.vmem_to_hbm [thread:$0]  %s1331, 256, %s1333, [#allocation7], 128, 128, 8
        $region108: #{tpu_custom_call.1} parent=71 // pred_fallthru
          _
        // Predicated region
        $region109: #{tpu_custom_call.1} parent=71 // pred_check
          %p1339 = pneg %p345
        $region110: #{tpu_custom_call.1} parent=71 // pred_check_branch
          %1341 = sbr.rel (%p1339) target = $region112
        $region111: #{tpu_custom_call.1} parent=71 // pred_region
          %1343 = dma.done [#allocation7], 256
        $region112: #{tpu_custom_call.1} parent=71 // pred_fallthru
          _
      $region72: #{tpu_custom_call.1} parent=5 // pred_fallthru
        _
      %p1344 = scmp.le.s32.totalorder 2, %s37
      // Predicated region
      $region113: #{tpu_custom_call.1} parent=5 // pred_check
        %p1345 = pneg %p1344
      $region114: #{tpu_custom_call.1} parent=5 // pred_check_branch
        %1347 = sbr.rel (%p1345) target = $region116
      $region115: #{tpu_custom_call.1} parent=5 // pred_region
        %s1348 = ssub.s32 %s37, 2
      $region116: #{tpu_custom_call.1} parent=5 // pred_fallthru
        _
    $region6: #{tpu_custom_call.1} parent=1 // loop_footer
      %s41 = sadd.s32 1, %s37
    $region7: #{tpu_custom_call.1} parent=1 // loop_footer_branch
      %36 = sbr.rel target = $region3
    $region8: #{tpu_custom_call.1} parent=1 // loop_exit
      _
    %1349 = vsyncpa [#allocation6], 1
    %s1350 = scalar_lea.sflag [#allocation6], 1
    %1351 = vsyncpa %s1350, 1
    %1352 = vsyncpa [#allocation9], 1
    %s1353 = scalar_lea.sflag [#allocation9], 1
    %1354 = vsyncpa %s1353, 1
    %1355 = vsyncpa [#allocation12], 1
    %1356 = vsyncpa [#allocation15], 1
    %1357 = vsyncpa [#allocation7], 1
    %s1358 = scalar_lea.sflag [#allocation7], 1
    %1359 = vsyncpa %s1358, 1

</llo_original>
